<compile_context>
chip_gen: v7x
topology: tpu7x:2x2x1
jax: 0.10.0
libtpu: 0.0.40
codegen_flags: <defaults>
</compile_context>

<pallas_src>
import numpy as np
import jax
import jax.numpy as jnp
from jax.experimental import pallas as pl
from jax.experimental.pallas import tpu as pltpu

# MXU operand dtype for the 3x3-conv and cls matmuls (weights + activations).
# The bilinear upsample matmuls and the +bias/ReLU epilogue stay f32.
_MXU_DTYPE = jnp.bfloat16


# ---------------------------------------------------------------------------
# Host-side (trace-time) constants
# ---------------------------------------------------------------------------

def _interp_matrix_1d(n_out, n_in):
    """1-D align_corners=True linear interpolation matrix, shape (n_out, n_in)."""
    m = np.zeros((n_out, n_in), np.float32)
    if n_out > 1:
        src = np.arange(n_out, dtype=np.float64) * (n_in - 1) / (n_out - 1)
    else:
        src = np.zeros((n_out,), np.float64)
    i0 = np.clip(np.floor(src).astype(np.int64), 0, n_in - 1)
    i1 = np.minimum(i0 + 1, n_in - 1)
    w1 = (src - i0).astype(np.float32)
    w0 = 1.0 - w1
    m[np.arange(n_out), i0] += w0
    m[np.arange(n_out), i1] += w1
    return m


def _interior_index(h, w):
    """Flat indices of the h*w interior pixels inside the (h+2)*(w+2) grid."""
    return ((np.arange(h)[:, None] + 1) * (w + 2)
            + (np.arange(w)[None, :] + 1)).reshape(-1)


def _ext_upsample_matrix_T(h_out, w_out, h_in, w_in, padded_in):
    """(S_in_repr, S_out_ext) matrix: right-multiplying a (C, S_in_repr)
    activation produces the bilinear(align_corners) upsample laid out on the
    zero-padded (h_out+2)*(w_out+2) flat grid, lane-extended by (w_out+3) zeros
    on each side.  Halo/extension columns are zero (= the 3x3 conv's padding).
    If padded_in, the input representation is itself a padded flat grid and the
    halo input columns get zero weight (so upstream halo garbage is ignored)."""
    m = np.kron(_interp_matrix_1d(h_out, h_in), _interp_matrix_1d(w_out, w_in))
    mp = np.zeros(((h_out + 2) * (w_out + 2), h_in * w_in), np.float32)
    mp[_interior_index(h_out, w_out), :] = m
    if padded_in:
        mq = np.zeros((mp.shape[0], (h_in + 2) * (w_in + 2)), np.float32)
        mq[:, _interior_index(h_in, w_in)] = mp
        mp = mq
    e = w_out + 3
    return np.pad(mp.T, ((0, 0), (e, e))).astype(np.float32)


def _interior_select(h, w):
    """0/1 matrix ((h+2)*(w+2), h*w) that drops halo columns via one matmul."""
    sel = np.zeros(((h + 2) * (w + 2), h * w), np.float32)
    sel[_interior_index(h, w), np.arange(h * w)] = 1.0
    return sel


# ---------------------------------------------------------------------------
# Fused decoder kernel
# ---------------------------------------------------------------------------

def _make_decoder_kernel(sizes, C, out_d):
    (H4, W4), (H3, W3), (H2, W2) = sizes

    def kernel(d5_ref, d4e_ref, d3e_ref, d2e_ref,
               m54_ref, m43_ref, m32_ref, sel_ref,
               w_ref, b_ref, wcls_ref, o_ref):
        w_mat = w_ref[...]          # (C, 9*C)  bf16, BN scale folded in
        bias = b_ref[...]           # (C, 1)    f32, conv bias + BN shift

        def stage(skip_ext, prev, m_ref, H, W):
            Wp = W + 2
            Sp = (H + 2) * Wp       # padded flat size of this stage
            off = Wp + 1            # lane extension on each side of the flat axis
            # Upsample `prev` onto this stage's padded+extended flat grid:
            # ONE f32 matmul; halo/extension columns of the matrix are zero.
            up = jnp.dot(prev, m_ref[...],
                         preferred_element_type=jnp.float32)   # (C, Sp + 2*off)
            s = skip_ext + up                                   # lane-dense f32
            # 3x3 conv (pad=1) as im2col: 9 static lane-shifted views stacked
            # along sublanes (tile-aligned, C=8 rows each) -> one K=72 matmul.
            taps = []
            for ky in range(3):
                for kx in range(3):
                    st = off + (ky - 1) * Wp + (kx - 1)
                    taps.append(s[:, st:st + Sp])
            stack = jnp.concatenate(taps, axis=0).astype(_MXU_DTYPE)  # (9C, Sp)
            conv = jnp.dot(w_mat, stack,
                           preferred_element_type=jnp.float32)        # (C, Sp)
            return jnp.maximum(conv + bias, 0.0)                      # f32

        a4 = stage(d4e_ref[0], d5_ref[0], m54_ref, H4, W4)
        a3 = stage(d3e_ref[0], a4, m43_ref, H3, W3)
        a2 = stage(d2e_ref[0], a3, m32_ref, H2, W2)
        # cls 1x1 conv (no bias) on the padded flat grid, then a 0/1 selection
        # matmul drops halo columns -> lane-dense (out_d, H2*W2) store (NCHW).
        logits = jnp.dot(wcls_ref[...], a2.astype(_MXU_DTYPE),
                         preferred_element_type=jnp.float32)   # (out_d, S2_pad)
        o_ref[0] = jnp.dot(logits, sel_ref[...],
                           preferred_element_type=jnp.float32)  # (out_d, H2*W2)

    return kernel


@jax.jit
def _decoder_forward(params, d5, d4, d3, d2):
    """d5..d2: NCHW f32 feature pyramid.  Returns NCHW mask (B, out_d, H2, W2)."""
    B, C, H5, W5 = d5.shape
    H4, W4 = d4.shape[2], d4.shape[3]
    H3, W3 = d3.shape[2], d3.shape[3]
    H2, W2 = d2.shape[2], d2.shape[3]
    out_d = params["w_cls_t"].shape[0]

    S5 = H5 * W5
    S4p, S3p, S2p = (H4 + 2) * (W4 + 2), (H3 + 2) * (W3 + 2), (H2 + 2) * (W2 + 2)
    S2 = H2 * W2
    S4e, S3e, S2e = S4p + 2 * (W4 + 3), S3p + 2 * (W3 + 3), S2p + 2 * (W2 + 3)

    # Trace-time numpy constants (bilinear-onto-padded-extended-grid matrices).
    m54 = jnp.asarray(_ext_upsample_matrix_T(H4, W4, H5, W5, padded_in=False))
    m43 = jnp.asarray(_ext_upsample_matrix_T(H3, W3, H4, W4, padded_in=True))
    m32 = jnp.asarray(_ext_upsample_matrix_T(H3 * 2, W3 * 2, H3, W3, padded_in=True)) \
        if (H2, W2) == (2 * H3, 2 * W3) else \
        jnp.asarray(_ext_upsample_matrix_T(H2, W2, H3, W3, padded_in=True))
    sel = jnp.asarray(_interior_select(H2, W2))

    # Skip inputs: 1-pixel spatial halo + flat lane extension (tiny, fused by
    # XLA inside this jit).  The upsampled operand's halo comes from the zero
    # columns of the m* matrices, so it never needs an explicit pad in-kernel.
    def skip_ext(x, H, W):
        xp = jnp.pad(x, ((0, 0), (0, 0), (1, 1), (1, 1)))
        xf = xp.reshape(B, C, (H + 2) * (W + 2))
        return jnp.pad(xf, ((0, 0), (0, 0), (W + 3, W + 3)))

    d4e = skip_ext(d4, H4, W4)
    d3e = skip_ext(d3, H3, W3)
    d2e = skip_ext(d2, H2, W2)
    d5f = d5.reshape(B, C, S5)

    kernel = _make_decoder_kernel(((H4, W4), (H3, W3), (H2, W2)), C, out_d)

    mask_flat = pl.pallas_call(
        kernel,
        out_shape=jax.ShapeDtypeStruct((B, out_d, S2), jnp.float32),
        grid=(B,),
        in_specs=[
            pl.BlockSpec((1, C, S5), lambda n: (n, 0, 0)),
            pl.BlockSpec((1, C, S4e), lambda n: (n, 0, 0)),
            pl.BlockSpec((1, C, S3e), lambda n: (n, 0, 0)),
            pl.BlockSpec((1, C, S2e), lambda n: (n, 0, 0)),
            # Grid-invariant operands: constant block index -> fetched once.
            pl.BlockSpec((S5, S4e), lambda n: (0, 0)),
            pl.BlockSpec((S4p, S3e), lambda n: (0, 0)),
            pl.BlockSpec((S3p, S2e), lambda n: (0, 0)),
            pl.BlockSpec((S2p, S2), lambda n: (0, 0)),
            pl.BlockSpec((C, 9 * C), lambda n: (0, 0)),
            pl.BlockSpec((C, 1), lambda n: (0, 0)),
            pl.BlockSpec((out_d, C), lambda n: (0, 0)),
        ],
        out_specs=pl.BlockSpec((1, out_d, S2), lambda n: (n, 0, 0)),
        compiler_params=pltpu.CompilerParams(
            dimension_semantics=("parallel",)),
    )(d5f, d4e, d3e, d2e, m54, m43, m32, sel,
      params["w_im2col"], params["bias"], params["w_cls_t"])

    return mask_flat.reshape(B, out_d, H2, W2)


# ---------------------------------------------------------------------------
# Decoder module (parameters built deterministically in-script)
# ---------------------------------------------------------------------------

def _bilinear_up_ref(x, ho, wo):
    """Reference gather-based bilinear(align_corners=True), NCHW."""
    b, c, hi, wi = x.shape
    ys = (jnp.arange(ho, dtype=jnp.float32) * (hi - 1) / (ho - 1)
          if ho > 1 else jnp.zeros((ho,), jnp.float32))
    xs = (jnp.arange(wo, dtype=jnp.float32) * (wi - 1) / (wo - 1)
          if wo > 1 else jnp.zeros((wo,), jnp.float32))
    y0 = jnp.floor(ys).astype(jnp.int32); y1 = jnp.minimum(y0 + 1, hi - 1)
    x0 = jnp.floor(xs).astype(jnp.int32); x1 = jnp.minimum(x0 + 1, wi - 1)
    wy = (ys - y0.astype(jnp.float32))[None, None, :, None]
    wx = (xs - x0.astype(jnp.float32))[None, None, None, :]
    rows = x[:, :, y0, :] * (1.0 - wy) + x[:, :, y1, :] * wy
    return rows[:, :, :, x0] * (1.0 - wx) + rows[:, :, :, x1] * wx


class DecoderPallas:
    def __init__(self, in_d, out_d, key):
        self.in_d, self.out_d = in_d, out_d
        k1, k2, k3, k4, k5 = jax.random.split(key, 5)
        # conv_sum1: 3x3 conv weight (kh, kw, Cin, Cout) + bias.
        w = jax.random.normal(k1, (3, 3, in_d, in_d), jnp.float32) * 0.1
        b = jax.random.normal(k2, (in_d,), jnp.float32) * 0.05
        # BatchNorm2d (inference / running stats), made non-trivial.
        gamma = 1.0 + 0.1 * jax.random.normal(k3, (in_d,), jnp.float32)
        beta = 0.05 * jax.random.normal(k4, (in_d,), jnp.float32)
        mean = jnp.zeros((in_d,), jnp.float32)
        var = jnp.ones((in_d,), jnp.float32)
        eps = 1e-5
        # cls: 1x1 conv, no bias -> (Cin, Cout).
        w_cls = jax.random.normal(k5, (in_d, out_d), jnp.float32) * 0.1
        # TODO(synk): conv_sum2 / conv_sum3 exist in the PyTorch __init__ but
        # are never used by Decoder.forward, so they are not instantiated.

        # Fold BN scale into the conv weight; conv bias + BN shift into a bias.
        scale = gamma / jnp.sqrt(var + eps)                     # (Cout,)
        w_folded = w * scale[None, None, None, :]               # HWIO, scaled
        bias_folded = (b - mean) * scale + beta                 # (Cout,)

        # f32 copies for the pure-XLA reference.
        self.w_folded_hwio = w_folded
        self.bias_vec = bias_folded
        self.w_cls_f32 = w_cls

        self.params = {
            # (Cout, 9*Cin) with (ky, kx, ci) minor ordering, matching the
            # in-kernel sublane-stacked im2col.
            "w_im2col": jnp.transpose(w_folded, (3, 0, 1, 2))
                           .reshape(in_d, 9 * in_d).astype(_MXU_DTYPE),
            "bias": bias_folded.reshape(in_d, 1).astype(jnp.float32),
            "w_cls_t": w_cls.T.astype(_MXU_DTYPE),               # (out_d, Cin)
        }

    def __call__(self, d5, d4, d3, d2):
        return _decoder_forward(self.params, d5, d4, d3, d2)

    def reference(self, d5, d4, d3, d2):
        """Pure-XLA reference (gather bilinear + conv_general_dilated), NCHW."""
        hp = jax.lax.Precision.HIGHEST

        def conv_bn_relu(x):
            y = jax.lax.conv_general_dilated(
                x, self.w_folded_hwio, window_strides=(1, 1), padding="SAME",
                dimension_numbers=("NCHW", "HWIO", "NCHW"), precision=hp)
            return jnp.maximum(y + self.bias_vec[None, :, None, None], 0.0)

        d5u = _bilinear_up_ref(d5, d4.shape[2], d4.shape[3])
        a4 = conv_bn_relu(d4 + d5u)
        d4u = _bilinear_up_ref(a4, d3.shape[2], d3.shape[3])
        a3 = conv_bn_relu(d3 + d4u)
        d3u = _bilinear_up_ref(a3, d2.shape[2], d2.shape[3])
        a2 = conv_bn_relu(d2 + d3u)
        return jnp.einsum("bchw,cd->bdhw", a2, self.w_cls_f32, precision=hp)


if __name__ == "__main__":
    key = jax.random.PRNGKey(0)
    kp, k5, k4, k3, k2 = jax.random.split(key, 5)

    B, C, OUT = 2, 8, 2
    # Feature pyramid, PyTorch-native NCHW.
    d5 = jax.random.normal(k5, (B, C, 2, 2), jnp.float32)
    d4 = jax.random.normal(k4, (B, C, 4, 4), jnp.float32)
    d3 = jax.random.normal(k3, (B, C, 8, 8), jnp.float32)
    d2 = jax.random.normal(k2, (B, C, 16, 16), jnp.float32)

    decoder = DecoderPallas(in_d=C, out_d=OUT, key=kp)
    mask = decoder(d5, d4, d3, d2)                  # NCHW (B, OUT, 16, 16)
    jax.block_until_ready(mask)

    assert mask.shape == (B, OUT, 16, 16)
    assert bool(jnp.all(jnp.isfinite(mask)))

    # Correctness check against the pure-XLA reference.  Tolerance is sized for
    # bf16 MXU operands over the 3 cascaded conv stages (observed ~1e-2); with
    # _MXU_DTYPE = float32 the expected mismatch is ~1e-3, so a layout or
    # indexing regression (errors of order 1) is still caught either way.
    ref = decoder.reference(d5, d4, d3, d2)
    max_err = float(jnp.max(jnp.abs(mask - ref)))
    tol = 4e-2 if _MXU_DTYPE == jnp.bfloat16 else 2e-3
    assert max_err < tol, f"kernel/reference mismatch: max abs err = {max_err}"

    print("KERNEL_OK")
</pallas_src>

<mosaic_0001>
module attributes {stable_mosaic.version = 11 : i64} {
  func.func @kernel(%arg0: i32, %arg1: memref<1x8x4xf32, #tpu.memory_space<vmem>>, %arg2: memref<1x8x50xf32, #tpu.memory_space<vmem>>, %arg3: memref<1x8x122xf32, #tpu.memory_space<vmem>>, %arg4: memref<1x8x362xf32, #tpu.memory_space<vmem>>, %arg5: memref<4x50xf32, #tpu.memory_space<vmem>>, %arg6: memref<36x122xf32, #tpu.memory_space<vmem>>, %arg7: memref<100x362xf32, #tpu.memory_space<vmem>>, %arg8: memref<324x256xf32, #tpu.memory_space<vmem>>, %arg9: memref<8x72xbf16, #tpu.memory_space<vmem>>, %arg10: memref<8x1xf32, #tpu.memory_space<vmem>>, %arg11: memref<2x8xbf16, #tpu.memory_space<vmem>>, %arg12: memref<1x2x256xf32, #tpu.memory_space<vmem>>) attributes {dimension_semantics = [#tpu.dimension_semantics<parallel>], iteration_bounds = array<i64: 2>, scalar_prefetch = 0 : i64, scratch_operands = 0 : i64, tpu.core_type = #tpu.core_type<tc>, window_params = [{transform_indices = @transform_0, window_bounds = array<i64: 1, 8, 4>}, {transform_indices = @transform_1, window_bounds = array<i64: 1, 8, 50>}, {transform_indices = @transform_2, window_bounds = array<i64: 1, 8, 122>}, {transform_indices = @transform_3, window_bounds = array<i64: 1, 8, 362>}, {pipeline_mode = #tpu.pipeline_mode<synchronous>, transform_indices = @transform_4, window_bounds = array<i64: 4, 50>}, {pipeline_mode = #tpu.pipeline_mode<synchronous>, transform_indices = @transform_5, window_bounds = array<i64: 36, 122>}, {pipeline_mode = #tpu.pipeline_mode<synchronous>, transform_indices = @transform_6, window_bounds = array<i64: 100, 362>}, {pipeline_mode = #tpu.pipeline_mode<synchronous>, transform_indices = @transform_7, window_bounds = array<i64: 324, 256>}, {pipeline_mode = #tpu.pipeline_mode<synchronous>, transform_indices = @transform_8, window_bounds = array<i64: 8, 72>}, {pipeline_mode = #tpu.pipeline_mode<synchronous>, transform_indices = @transform_9, window_bounds = array<i64: 8, 1>}, {pipeline_mode = #tpu.pipeline_mode<synchronous>, transform_indices = @transform_10, window_bounds = array<i64: 2, 8>}, {transform_indices = @transform_11, window_bounds = array<i64: 1, 2, 256>}]} {
    %c0 = arith.constant 0 : index
    %c0_0 = arith.constant 0 : index
    %0 = vector.load %arg9[%c0, %c0_0] : memref<8x72xbf16, #tpu.memory_space<vmem>>, vector<8x72xbf16>
    %c0_1 = arith.constant 0 : index
    %c0_2 = arith.constant 0 : index
    %1 = vector.load %arg10[%c0_1, %c0_2] : memref<8x1xf32, #tpu.memory_space<vmem>>, vector<8x1xf32>
    %c0_3 = arith.constant 0 : index
    %c0_4 = arith.constant 0 : index
    %c0_5 = arith.constant 0 : index
    %2 = vector.load %arg2[%c0_3, %c0_4, %c0_5] : memref<1x8x50xf32, #tpu.memory_space<vmem>>, vector<1x8x50xf32>
    %3 = vector.shape_cast %2 : vector<1x8x50xf32> to vector<8x50xf32>
    %c0_6 = arith.constant 0 : index
    %c0_7 = arith.constant 0 : index
    %c0_8 = arith.constant 0 : index
    %4 = vector.load %arg1[%c0_6, %c0_7, %c0_8] : memref<1x8x4xf32, #tpu.memory_space<vmem>>, vector<1x8x4xf32>
    %5 = vector.shape_cast %4 : vector<1x8x4xf32> to vector<8x4xf32>
    %c0_9 = arith.constant 0 : index
    %c0_10 = arith.constant 0 : index
    %6 = vector.load %arg5[%c0_9, %c0_10] : memref<4x50xf32, #tpu.memory_space<vmem>>, vector<4x50xf32>
    %cst = arith.constant dense<0.000000e+00> : vector<8x50xf32>
    %7 = tpu.matmul %5, %6, %cst {dimension_numbers = #tpu.dot_dimension_numbers<[1], [0], [0], [1], [0, 0, 1, 1], [], []>} : vector<8x4xf32>, vector<4x50xf32>, vector<8x50xf32> -> vector<8x50xf32>
    %8 = arith.addf %3, %7 : vector<8x50xf32>
    %9 = vector.extract_strided_slice %8 {offsets = [0, 0], sizes = [8, 36], strides = [1, 1]} : vector<8x50xf32> to vector<8x36xf32>
    %10 = vector.extract_strided_slice %8 {offsets = [0, 1], sizes = [8, 36], strides = [1, 1]} : vector<8x50xf32> to vector<8x36xf32>
    %11 = vector.extract_strided_slice %8 {offsets = [0, 2], sizes = [8, 36], strides = [1, 1]} : vector<8x50xf32> to vector<8x36xf32>
    %12 = vector.extract_strided_slice %8 {offsets = [0, 6], sizes = [8, 36], strides = [1, 1]} : vector<8x50xf32> to vector<8x36xf32>
    %13 = vector.extract_strided_slice %8 {offsets = [0, 7], sizes = [8, 36], strides = [1, 1]} : vector<8x50xf32> to vector<8x36xf32>
    %14 = vector.extract_strided_slice %8 {offsets = [0, 8], sizes = [8, 36], strides = [1, 1]} : vector<8x50xf32> to vector<8x36xf32>
    %15 = vector.extract_strided_slice %8 {offsets = [0, 12], sizes = [8, 36], strides = [1, 1]} : vector<8x50xf32> to vector<8x36xf32>
    %16 = vector.extract_strided_slice %8 {offsets = [0, 13], sizes = [8, 36], strides = [1, 1]} : vector<8x50xf32> to vector<8x36xf32>
    %17 = vector.extract_strided_slice %8 {offsets = [0, 14], sizes = [8, 36], strides = [1, 1]} : vector<8x50xf32> to vector<8x36xf32>
    %18 = tpu.concatenate %9, %10, %11, %12, %13, %14, %15, %16, %17 in 0 : vector<8x36xf32>, vector<8x36xf32>, vector<8x36xf32>, vector<8x36xf32>, vector<8x36xf32>, vector<8x36xf32>, vector<8x36xf32>, vector<8x36xf32>, vector<8x36xf32> -> vector<72x36xf32>
    %19 = arith.truncf %18 : vector<72x36xf32> to vector<72x36xbf16>
    %cst_11 = arith.constant dense<0.000000e+00> : vector<8x36xf32>
    %20 = tpu.matmul %0, %19, %cst_11 {dimension_numbers = #tpu.dot_dimension_numbers<[1], [0], [0], [1], [0, 0, 1, 1], [], []>} : vector<8x72xbf16>, vector<72x36xbf16>, vector<8x36xf32> -> vector<8x36xf32>
    %21 = vector.broadcast %1 : vector<8x1xf32> to vector<8x36xf32>
    %22 = arith.addf %20, %21 : vector<8x36xf32>
    %cst_12 = arith.constant 0.000000e+00 : f32
    %23 = vector.broadcast %cst_12 : f32 to vector<8x36xf32>
    %24 = arith.maximumf %22, %23 : vector<8x36xf32>
    %c0_13 = arith.constant 0 : index
    %c0_14 = arith.constant 0 : index
    %c0_15 = arith.constant 0 : index
    %25 = vector.load %arg3[%c0_13, %c0_14, %c0_15] : memref<1x8x122xf32, #tpu.memory_space<vmem>>, vector<1x8x122xf32>
    %26 = vector.shape_cast %25 : vector<1x8x122xf32> to vector<8x122xf32>
    %c0_16 = arith.constant 0 : index
    %c0_17 = arith.constant 0 : index
    %27 = vector.load %arg6[%c0_16, %c0_17] : memref<36x122xf32, #tpu.memory_space<vmem>>, vector<36x122xf32>
    %cst_18 = arith.constant dense<0.000000e+00> : vector<8x122xf32>
    %28 = tpu.matmul %24, %27, %cst_18 {dimension_numbers = #tpu.dot_dimension_numbers<[1], [0], [0], [1], [0, 0, 1, 1], [], []>} : vector<8x36xf32>, vector<36x122xf32>, vector<8x122xf32> -> vector<8x122xf32>
    %29 = arith.addf %26, %28 : vector<8x122xf32>
    %30 = vector.extract_strided_slice %29 {offsets = [0, 0], sizes = [8, 100], strides = [1, 1]} : vector<8x122xf32> to vector<8x100xf32>
    %31 = vector.extract_strided_slice %29 {offsets = [0, 1], sizes = [8, 100], strides = [1, 1]} : vector<8x122xf32> to vector<8x100xf32>
    %32 = vector.extract_strided_slice %29 {offsets = [0, 2], sizes = [8, 100], strides = [1, 1]} : vector<8x122xf32> to vector<8x100xf32>
    %33 = vector.extract_strided_slice %29 {offsets = [0, 10], sizes = [8, 100], strides = [1, 1]} : vector<8x122xf32> to vector<8x100xf32>
    %34 = vector.extract_strided_slice %29 {offsets = [0, 11], sizes = [8, 100], strides = [1, 1]} : vector<8x122xf32> to vector<8x100xf32>
    %35 = vector.extract_strided_slice %29 {offsets = [0, 12], sizes = [8, 100], strides = [1, 1]} : vector<8x122xf32> to vector<8x100xf32>
    %36 = vector.extract_strided_slice %29 {offsets = [0, 20], sizes = [8, 100], strides = [1, 1]} : vector<8x122xf32> to vector<8x100xf32>
    %37 = vector.extract_strided_slice %29 {offsets = [0, 21], sizes = [8, 100], strides = [1, 1]} : vector<8x122xf32> to vector<8x100xf32>
    %38 = vector.extract_strided_slice %29 {offsets = [0, 22], sizes = [8, 100], strides = [1, 1]} : vector<8x122xf32> to vector<8x100xf32>
    %39 = tpu.concatenate %30, %31, %32, %33, %34, %35, %36, %37, %38 in 0 : vector<8x100xf32>, vector<8x100xf32>, vector<8x100xf32>, vector<8x100xf32>, vector<8x100xf32>, vector<8x100xf32>, vector<8x100xf32>, vector<8x100xf32>, vector<8x100xf32> -> vector<72x100xf32>
    %40 = arith.truncf %39 : vector<72x100xf32> to vector<72x100xbf16>
    %cst_19 = arith.constant dense<0.000000e+00> : vector<8x100xf32>
    %41 = tpu.matmul %0, %40, %cst_19 {dimension_numbers = #tpu.dot_dimension_numbers<[1], [0], [0], [1], [0, 0, 1, 1], [], []>} : vector<8x72xbf16>, vector<72x100xbf16>, vector<8x100xf32> -> vector<8x100xf32>
    %42 = vector.broadcast %1 : vector<8x1xf32> to vector<8x100xf32>
    %43 = arith.addf %41, %42 : vector<8x100xf32>
    %cst_20 = arith.constant 0.000000e+00 : f32
    %44 = vector.broadcast %cst_20 : f32 to vector<8x100xf32>
    %45 = arith.maximumf %43, %44 : vector<8x100xf32>
    %c0_21 = arith.constant 0 : index
    %c0_22 = arith.constant 0 : index
    %c0_23 = arith.constant 0 : index
    %46 = vector.load %arg4[%c0_21, %c0_22, %c0_23] : memref<1x8x362xf32, #tpu.memory_space<vmem>>, vector<1x8x362xf32>
    %47 = vector.shape_cast %46 : vector<1x8x362xf32> to vector<8x362xf32>
    %c0_24 = arith.constant 0 : index
    %c0_25 = arith.constant 0 : index
    %48 = vector.load %arg7[%c0_24, %c0_25] : memref<100x362xf32, #tpu.memory_space<vmem>>, vector<100x362xf32>
    %cst_26 = arith.constant dense<0.000000e+00> : vector<8x362xf32>
    %49 = tpu.matmul %45, %48, %cst_26 {dimension_numbers = #tpu.dot_dimension_numbers<[1], [0], [0], [1], [0, 0, 1, 1], [], []>} : vector<8x100xf32>, vector<100x362xf32>, vector<8x362xf32> -> vector<8x362xf32>
    %50 = arith.addf %47, %49 : vector<8x362xf32>
    %51 = vector.extract_strided_slice %50 {offsets = [0, 0], sizes = [8, 324], strides = [1, 1]} : vector<8x362xf32> to vector<8x324xf32>
    %52 = vector.extract_strided_slice %50 {offsets = [0, 1], sizes = [8, 324], strides = [1, 1]} : vector<8x362xf32> to vector<8x324xf32>
    %53 = vector.extract_strided_slice %50 {offsets = [0, 2], sizes = [8, 324], strides = [1, 1]} : vector<8x362xf32> to vector<8x324xf32>
    %54 = vector.extract_strided_slice %50 {offsets = [0, 18], sizes = [8, 324], strides = [1, 1]} : vector<8x362xf32> to vector<8x324xf32>
    %55 = vector.extract_strided_slice %50 {offsets = [0, 19], sizes = [8, 324], strides = [1, 1]} : vector<8x362xf32> to vector<8x324xf32>
    %56 = vector.extract_strided_slice %50 {offsets = [0, 20], sizes = [8, 324], strides = [1, 1]} : vector<8x362xf32> to vector<8x324xf32>
    %57 = vector.extract_strided_slice %50 {offsets = [0, 36], sizes = [8, 324], strides = [1, 1]} : vector<8x362xf32> to vector<8x324xf32>
    %58 = vector.extract_strided_slice %50 {offsets = [0, 37], sizes = [8, 324], strides = [1, 1]} : vector<8x362xf32> to vector<8x324xf32>
    %59 = vector.extract_strided_slice %50 {offsets = [0, 38], sizes = [8, 324], strides = [1, 1]} : vector<8x362xf32> to vector<8x324xf32>
    %60 = tpu.concatenate %51, %52, %53, %54, %55, %56, %57, %58, %59 in 0 : vector<8x324xf32>, vector<8x324xf32>, vector<8x324xf32>, vector<8x324xf32>, vector<8x324xf32>, vector<8x324xf32>, vector<8x324xf32>, vector<8x324xf32>, vector<8x324xf32> -> vector<72x324xf32>
    %61 = arith.truncf %60 : vector<72x324xf32> to vector<72x324xbf16>
    %cst_27 = arith.constant dense<0.000000e+00> : vector<8x324xf32>
    %62 = tpu.matmul %0, %61, %cst_27 {dimension_numbers = #tpu.dot_dimension_numbers<[1], [0], [0], [1], [0, 0, 1, 1], [], []>} : vector<8x72xbf16>, vector<72x324xbf16>, vector<8x324xf32> -> vector<8x324xf32>
    %63 = vector.broadcast %1 : vector<8x1xf32> to vector<8x324xf32>
    %64 = arith.addf %62, %63 : vector<8x324xf32>
    %cst_28 = arith.constant 0.000000e+00 : f32
    %65 = vector.broadcast %cst_28 : f32 to vector<8x324xf32>
    %66 = arith.maximumf %64, %65 : vector<8x324xf32>
    %c0_29 = arith.constant 0 : index
    %c0_30 = arith.constant 0 : index
    %67 = vector.load %arg11[%c0_29, %c0_30] : memref<2x8xbf16, #tpu.memory_space<vmem>>, vector<2x8xbf16>
    %68 = arith.truncf %66 : vector<8x324xf32> to vector<8x324xbf16>
    %cst_31 = arith.constant dense<0.000000e+00> : vector<2x324xf32>
    %69 = tpu.matmul %67, %68, %cst_31 {dimension_numbers = #tpu.dot_dimension_numbers<[1], [0], [0], [1], [0, 0, 1, 1], [], []>} : vector<2x8xbf16>, vector<8x324xbf16>, vector<2x324xf32> -> vector<2x324xf32>
    %c0_32 = arith.constant 0 : index
    %c0_33 = arith.constant 0 : index
    %70 = vector.load %arg8[%c0_32, %c0_33] : memref<324x256xf32, #tpu.memory_space<vmem>>, vector<324x256xf32>
    %cst_34 = arith.constant dense<0.000000e+00> : vector<2x256xf32>
    %71 = tpu.matmul %69, %70, %cst_34 {dimension_numbers = #tpu.dot_dimension_numbers<[1], [0], [0], [1], [0, 0, 1, 1], [], []>} : vector<2x324xf32>, vector<324x256xf32>, vector<2x256xf32> -> vector<2x256xf32>
    %c0_35 = arith.constant 0 : index
    %c0_36 = arith.constant 0 : index
    %c0_37 = arith.constant 0 : index
    %72 = vector.load %arg12[%c0_35, %c0_36, %c0_37] : memref<1x2x256xf32, #tpu.memory_space<vmem>>, vector<1x2x256xf32>
    %73 = vector.shape_cast %72 : vector<1x2x256xf32> to vector<2x256xf32>
    %74 = vector.shape_cast %71 : vector<2x256xf32> to vector<1x2x256xf32>
    tpu.vector_store %arg12[%c0_35, %c0_36, %c0_37], %74 {strides = array<i32>} : memref<1x2x256xf32, #tpu.memory_space<vmem>>, vector<1x2x256xf32>,
    return
  }
  func.func @transform_0(%arg0: i32) -> (i32, i32, i32) {
    %c0_i32 = arith.constant 0 : i32
    %c0_i32_0 = arith.constant 0 : i32
    %c0_i32_1 = arith.constant 0 : i32
    return %arg0, %c0_i32, %c0_i32_0 : i32, i32, i32
  }
  func.func @transform_1(%arg0: i32) -> (i32, i32, i32) {
    %c0_i32 = arith.constant 0 : i32
    %c0_i32_0 = arith.constant 0 : i32
    %c0_i32_1 = arith.constant 0 : i32
    return %arg0, %c0_i32, %c0_i32_0 : i32, i32, i32
  }
  func.func @transform_2(%arg0: i32) -> (i32, i32, i32) {
    %c0_i32 = arith.constant 0 : i32
    %c0_i32_0 = arith.constant 0 : i32
    %c0_i32_1 = arith.constant 0 : i32
    return %arg0, %c0_i32, %c0_i32_0 : i32, i32, i32
  }
  func.func @transform_3(%arg0: i32) -> (i32, i32, i32) {
    %c0_i32 = arith.constant 0 : i32
    %c0_i32_0 = arith.constant 0 : i32
    %c0_i32_1 = arith.constant 0 : i32
    return %arg0, %c0_i32, %c0_i32_0 : i32, i32, i32
  }
  func.func @transform_4(%arg0: i32) -> (i32, i32) {
    %c0_i32 = arith.constant 0 : i32
    %c0_i32_0 = arith.constant 0 : i32
    %c0_i32_1 = arith.constant 0 : i32
    return %c0_i32, %c0_i32_0 : i32, i32
  }
  func.func @transform_5(%arg0: i32) -> (i32, i32) {
    %c0_i32 = arith.constant 0 : i32
    %c0_i32_0 = arith.constant 0 : i32
    %c0_i32_1 = arith.constant 0 : i32
    return %c0_i32, %c0_i32_0 : i32, i32
  }
  func.func @transform_6(%arg0: i32) -> (i32, i32) {
    %c0_i32 = arith.constant 0 : i32
    %c0_i32_0 = arith.constant 0 : i32
    %c0_i32_1 = arith.constant 0 : i32
    return %c0_i32, %c0_i32_0 : i32, i32
  }
  func.func @transform_7(%arg0: i32) -> (i32, i32) {
    %c0_i32 = arith.constant 0 : i32
    %c0_i32_0 = arith.constant 0 : i32
    %c0_i32_1 = arith.constant 0 : i32
    return %c0_i32, %c0_i32_0 : i32, i32
  }
  func.func @transform_8(%arg0: i32) -> (i32, i32) {
    %c0_i32 = arith.constant 0 : i32
    %c0_i32_0 = arith.constant 0 : i32
    %c0_i32_1 = arith.constant 0 : i32
    return %c0_i32, %c0_i32_0 : i32, i32
  }
  func.func @transform_9(%arg0: i32) -> (i32, i32) {
    %c0_i32 = arith.constant 0 : i32
    %c0_i32_0 = arith.constant 0 : i32
    %c0_i32_1 = arith.constant 0 : i32
    return %c0_i32, %c0_i32_0 : i32, i32
  }
  func.func @transform_10(%arg0: i32) -> (i32, i32) {
    %c0_i32 = arith.constant 0 : i32
    %c0_i32_0 = arith.constant 0 : i32
    %c0_i32_1 = arith.constant 0 : i32
    return %c0_i32, %c0_i32_0 : i32, i32
  }
  func.func @transform_11(%arg0: i32) -> (i32, i32, i32) {
    %c0_i32 = arith.constant 0 : i32
    %c0_i32_0 = arith.constant 0 : i32
    %c0_i32_1 = arith.constant 0 : i32
    return %arg0, %c0_i32, %c0_i32_0 : i32, i32, i32
  }
}

</mosaic_0001>

<llo_original>
// kernel: _decoder_forward.1
$region0: #{_decoder_forward.1}
  #allocation0 [shape = 'u32[]', space=smem, size = 0x4, offset = 0x4, fixed_abs, tag = 'smem constant byte address 0x4 - core index']
  #allocation1 [shape = 'u32[144,128]{1,0:T(1,128)}', space=vmem, size = 0x12000, scoped, tag = 'internal scratch']
  %s0 = inlined_call_operand.vmem [shape: f32[2,8,4], index: 0, kind: input, shape index: {}]
  %s1 = inlined_call_operand.vmem [shape: f32[2,8,50], index: 1, kind: input, shape index: {}]
  %s2 = inlined_call_operand.vmem [shape: f32[2,8,122], index: 2, kind: input, shape index: {}]
  %s3 = inlined_call_operand.vmem [shape: f32[2,8,362], index: 3, kind: input, shape index: {}]
  %s4 = inlined_call_operand.vmem [shape: f32[4,50], index: 4, kind: input, shape index: {}]
  %s5 = inlined_call_operand.vmem [shape: f32[36,122], index: 5, kind: input, shape index: {}]
  %s6 = inlined_call_operand.vmem [shape: f32[100,362], index: 6, kind: input, shape index: {}]
  %s7 = inlined_call_operand.vmem [shape: f32[324,256], index: 7, kind: input, shape index: {}]
  %s8 = inlined_call_operand.vmem [shape: bf16[8,72], index: 8, kind: input, shape index: {}]
  %s9 = inlined_call_operand.vmem [shape: f32[8,1], index: 9, kind: input, shape index: {}]
  %s10 = inlined_call_operand.vmem [shape: bf16[2,8], index: 10, kind: input, shape index: {}]
  %s11 = inlined_call_operand.vmem [shape: f32[2,2,256], index: 11, kind: output, shape index: {}]
  %s12 = sld [smem:[#allocation0]]
  $region77: #{_decoder_forward.1} parent=0
    _
  %s14 = ssub.s32 1, %s12
  %s15 = scalar_select 0, %s14, %s12
  loop: start=0, step=1, limit=4
  $region2: #{_decoder_forward.1} parent=0 // loop_pre_header
    _
  $region3: #{_decoder_forward.1} parent=0 // loop_header
    %s17 = sphi 0, %s21
    %p18 = scmp.ge.s32.totalorder %s17, 4
    %s27 = sphi 0, %s29
    %s30 = sphi 0, %s27
    %s31 = sphi 0, %s30
    %s47 = sphi 0, %s31
    %s53 = sphi 0, %s55
    %s56 = sphi 0, %s53
    %s57 = sphi 0, %s56
    %s73 = sphi 0, %s57
    %s79 = sphi 0, %s81
    %s82 = sphi 0, %s79
    %s83 = sphi 0, %s82
    %s99 = sphi 0, %s83
    %s105 = sphi 0, %s107
    %s108 = sphi 0, %s105
    %s109 = sphi 0, %s108
    %s125 = sphi 0, %s109
    %s129 = sphi 0, %s129
    %s131 = sphi 0, %s129
    %s132 = sphi 0, %s131
    %s146 = sphi 0, %s132
    %s150 = sphi 0, %s150
    %s152 = sphi 0, %s150
    %s153 = sphi 0, %s152
    %s167 = sphi 0, %s153
    %s171 = sphi 0, %s171
    %s173 = sphi 0, %s171
    %s174 = sphi 0, %s173
    %s188 = sphi 0, %s174
    %s192 = sphi 0, %s192
    %s194 = sphi 0, %s192
    %s195 = sphi 0, %s194
    %s209 = sphi 0, %s195
    %s213 = sphi 0, %s213
    %s215 = sphi 0, %s213
    %s216 = sphi 0, %s215
    %s230 = sphi 0, %s216
    %s234 = sphi 0, %s234
    %s236 = sphi 0, %s234
    %s237 = sphi 0, %s236
    %s251 = sphi 0, %s237
    %s255 = sphi 0, %s255
    %s257 = sphi 0, %s255
    %s258 = sphi 0, %s257
    %s272 = sphi 0, %s258
    %s278 = sphi 0, %s280
    %s281 = sphi 0, %s278
    %s282 = sphi 0, %s281
    %s298 = sphi 0, %s282
  $region4: #{_decoder_forward.1} parent=0 // loop_header_branch
    %20 = sbr.rel (%p18) target = $region8
  $region5: #{_decoder_forward.1} parent=0 // loop_body
    %s22 = ssub.s32 %s17, 1
    %s23 = ssub.s32 %s17, 2
    %s24 = sadd.s32 %s17, 1
    %s25 = ssub.s32 %s17, %s24
    %p26 = scmp.eq.s32.totalorder %s25, 0
    %s28 = sadd.s32 %s27, 1
    %s29 = scalar_select %p26, %s27, %s28
    %p32 = pneg %p26
    %p33 = scmp.eq.s32.totalorder %s17, 1
    %p34 = por %p32, %p33
    %p35 = scmp.ne.s32.totalorder %s27, %s30
    %p36 = scmp.eq.s32.totalorder %s17, 0
    %p37 = por %p35, %p36
    %p38 = scmp.ne.s32.totalorder %s27, %s30
    %p39 = scmp.eq.s32.totalorder %s22, 1
    %p40 = por %p38, %p39
    %p41 = scmp.ne.s32.totalorder %s30, %s31
    %p42 = scmp.eq.s32.totalorder %s22, 0
    %p43 = por %p41, %p42
    %p44 = scmp.ne.s32.totalorder %s30, %s31
    %p45 = scmp.eq.s32.totalorder %s23, 1
    %p46 = por %p44, %p45
    %p48 = scmp.ne.s32.totalorder %s31, %s47
    %p49 = scmp.eq.s32.totalorder %s23, 0
    %p50 = por %p48, %p49
    %s51 = ssub.s32 %s17, %s24
    %p52 = scmp.eq.s32.totalorder %s51, 0
    %s54 = sadd.s32 %s53, 1
    %s55 = scalar_select %p52, %s53, %s54
    %p58 = pneg %p52
    %p59 = scmp.eq.s32.totalorder %s17, 1
    %p60 = por %p58, %p59
    %p61 = scmp.ne.s32.totalorder %s53, %s56
    %p62 = scmp.eq.s32.totalorder %s17, 0
    %p63 = por %p61, %p62
    %p64 = scmp.ne.s32.totalorder %s53, %s56
    %p65 = scmp.eq.s32.totalorder %s22, 1
    %p66 = por %p64, %p65
    %p67 = scmp.ne.s32.totalorder %s56, %s57
    %p68 = scmp.eq.s32.totalorder %s22, 0
    %p69 = por %p67, %p68
    %p70 = scmp.ne.s32.totalorder %s56, %s57
    %p71 = scmp.eq.s32.totalorder %s23, 1
    %p72 = por %p70, %p71
    %p74 = scmp.ne.s32.totalorder %s57, %s73
    %p75 = scmp.eq.s32.totalorder %s23, 0
    %p76 = por %p74, %p75
    %s77 = ssub.s32 %s17, %s24
    %p78 = scmp.eq.s32.totalorder %s77, 0
    %s80 = sadd.s32 %s79, 1
    %s81 = scalar_select %p78, %s79, %s80
    %p84 = pneg %p78
    %p85 = scmp.eq.s32.totalorder %s17, 1
    %p86 = por %p84, %p85
    %p87 = scmp.ne.s32.totalorder %s79, %s82
    %p88 = scmp.eq.s32.totalorder %s17, 0
    %p89 = por %p87, %p88
    %p90 = scmp.ne.s32.totalorder %s79, %s82
    %p91 = scmp.eq.s32.totalorder %s22, 1
    %p92 = por %p90, %p91
    %p93 = scmp.ne.s32.totalorder %s82, %s83
    %p94 = scmp.eq.s32.totalorder %s22, 0
    %p95 = por %p93, %p94
    %p96 = scmp.ne.s32.totalorder %s82, %s83
    %p97 = scmp.eq.s32.totalorder %s23, 1
    %p98 = por %p96, %p97
    %p100 = scmp.ne.s32.totalorder %s83, %s99
    %p101 = scmp.eq.s32.totalorder %s23, 0
    %p102 = por %p100, %p101
    %s103 = ssub.s32 %s17, %s24
    %p104 = scmp.eq.s32.totalorder %s103, 0
    %s106 = sadd.s32 %s105, 1
    %s107 = scalar_select %p104, %s105, %s106
    %p110 = pneg %p104
    %p111 = scmp.eq.s32.totalorder %s17, 1
    %p112 = por %p110, %p111
    %p113 = scmp.ne.s32.totalorder %s105, %s108
    %p114 = scmp.eq.s32.totalorder %s17, 0
    %p115 = por %p113, %p114
    %p116 = scmp.ne.s32.totalorder %s105, %s108
    %p117 = scmp.eq.s32.totalorder %s22, 1
    %p118 = por %p116, %p117
    %p119 = scmp.ne.s32.totalorder %s108, %s109
    %p120 = scmp.eq.s32.totalorder %s22, 0
    %p121 = por %p119, %p120
    %p122 = scmp.ne.s32.totalorder %s108, %s109
    %p123 = scmp.eq.s32.totalorder %s23, 1
    %p124 = por %p122, %p123
    %p126 = scmp.ne.s32.totalorder %s109, %s125
    %p127 = scmp.eq.s32.totalorder %s23, 0
    %p128 = por %p126, %p127
    %s130 = sadd.s32 %s129, 1
    %p133 = scmp.eq.s32.totalorder %s17, 1
    %p134 = scmp.ne.s32.totalorder %s129, %s131
    %p135 = scmp.eq.s32.totalorder %s17, 0
    %p136 = por %p134, %p135
    %p137 = scmp.ne.s32.totalorder %s129, %s131
    %p138 = scmp.eq.s32.totalorder %s22, 1
    %p139 = por %p137, %p138
    %p140 = scmp.ne.s32.totalorder %s131, %s132
    %p141 = scmp.eq.s32.totalorder %s22, 0
    %p142 = por %p140, %p141
    %p143 = scmp.ne.s32.totalorder %s131, %s132
    %p144 = scmp.eq.s32.totalorder %s23, 1
    %p145 = por %p143, %p144
    %p147 = scmp.ne.s32.totalorder %s132, %s146
    %p148 = scmp.eq.s32.totalorder %s23, 0
    %p149 = por %p147, %p148
    %s151 = sadd.s32 %s150, 1
    %p154 = scmp.eq.s32.totalorder %s17, 1
    %p155 = scmp.ne.s32.totalorder %s150, %s152
    %p156 = scmp.eq.s32.totalorder %s17, 0
    %p157 = por %p155, %p156
    %p158 = scmp.ne.s32.totalorder %s150, %s152
    %p159 = scmp.eq.s32.totalorder %s22, 1
    %p160 = por %p158, %p159
    %p161 = scmp.ne.s32.totalorder %s152, %s153
    %p162 = scmp.eq.s32.totalorder %s22, 0
    %p163 = por %p161, %p162
    %p164 = scmp.ne.s32.totalorder %s152, %s153
    %p165 = scmp.eq.s32.totalorder %s23, 1
    %p166 = por %p164, %p165
    %p168 = scmp.ne.s32.totalorder %s153, %s167
    %p169 = scmp.eq.s32.totalorder %s23, 0
    %p170 = por %p168, %p169
    %s172 = sadd.s32 %s171, 1
    %p175 = scmp.eq.s32.totalorder %s17, 1
    %p176 = scmp.ne.s32.totalorder %s171, %s173
    %p177 = scmp.eq.s32.totalorder %s17, 0
    %p178 = por %p176, %p177
    %p179 = scmp.ne.s32.totalorder %s171, %s173
    %p180 = scmp.eq.s32.totalorder %s22, 1
    %p181 = por %p179, %p180
    %p182 = scmp.ne.s32.totalorder %s173, %s174
    %p183 = scmp.eq.s32.totalorder %s22, 0
    %p184 = por %p182, %p183
    %p185 = scmp.ne.s32.totalorder %s173, %s174
    %p186 = scmp.eq.s32.totalorder %s23, 1
    %p187 = por %p185, %p186
    %p189 = scmp.ne.s32.totalorder %s174, %s188
    %p190 = scmp.eq.s32.totalorder %s23, 0
    %p191 = por %p189, %p190
    %s193 = sadd.s32 %s192, 1
    %p196 = scmp.eq.s32.totalorder %s17, 1
    %p197 = scmp.ne.s32.totalorder %s192, %s194
    %p198 = scmp.eq.s32.totalorder %s17, 0
    %p199 = por %p197, %p198
    %p200 = scmp.ne.s32.totalorder %s192, %s194
    %p201 = scmp.eq.s32.totalorder %s22, 1
    %p202 = por %p200, %p201
    %p203 = scmp.ne.s32.totalorder %s194, %s195
    %p204 = scmp.eq.s32.totalorder %s22, 0
    %p205 = por %p203, %p204
    %p206 = scmp.ne.s32.totalorder %s194, %s195
    %p207 = scmp.eq.s32.totalorder %s23, 1
    %p208 = por %p206, %p207
    %p210 = scmp.ne.s32.totalorder %s195, %s209
    %p211 = scmp.eq.s32.totalorder %s23, 0
    %p212 = por %p210, %p211
    %s214 = sadd.s32 %s213, 1
    %p217 = scmp.eq.s32.totalorder %s17, 1
    %p218 = scmp.ne.s32.totalorder %s213, %s215
    %p219 = scmp.eq.s32.totalorder %s17, 0
    %p220 = por %p218, %p219
    %p221 = scmp.ne.s32.totalorder %s213, %s215
    %p222 = scmp.eq.s32.totalorder %s22, 1
    %p223 = por %p221, %p222
    %p224 = scmp.ne.s32.totalorder %s215, %s216
    %p225 = scmp.eq.s32.totalorder %s22, 0
    %p226 = por %p224, %p225
    %p227 = scmp.ne.s32.totalorder %s215, %s216
    %p228 = scmp.eq.s32.totalorder %s23, 1
    %p229 = por %p227, %p228
    %p231 = scmp.ne.s32.totalorder %s216, %s230
    %p232 = scmp.eq.s32.totalorder %s23, 0
    %p233 = por %p231, %p232
    %s235 = sadd.s32 %s234, 1
    %p238 = scmp.eq.s32.totalorder %s17, 1
    %p239 = scmp.ne.s32.totalorder %s234, %s236
    %p240 = scmp.eq.s32.totalorder %s17, 0
    %p241 = por %p239, %p240
    %p242 = scmp.ne.s32.totalorder %s234, %s236
    %p243 = scmp.eq.s32.totalorder %s22, 1
    %p244 = por %p242, %p243
    %p245 = scmp.ne.s32.totalorder %s236, %s237
    %p246 = scmp.eq.s32.totalorder %s22, 0
    %p247 = por %p245, %p246
    %p248 = scmp.ne.s32.totalorder %s236, %s237
    %p249 = scmp.eq.s32.totalorder %s23, 1
    %p250 = por %p248, %p249
    %p252 = scmp.ne.s32.totalorder %s237, %s251
    %p253 = scmp.eq.s32.totalorder %s23, 0
    %p254 = por %p252, %p253
    %s256 = sadd.s32 %s255, 1
    %p259 = scmp.eq.s32.totalorder %s17, 1
    %p260 = scmp.ne.s32.totalorder %s255, %s257
    %p261 = scmp.eq.s32.totalorder %s17, 0
    %p262 = por %p260, %p261
    %p263 = scmp.ne.s32.totalorder %s255, %s257
    %p264 = scmp.eq.s32.totalorder %s22, 1
    %p265 = por %p263, %p264
    %p266 = scmp.ne.s32.totalorder %s257, %s258
    %p267 = scmp.eq.s32.totalorder %s22, 0
    %p268 = por %p266, %p267
    %p269 = scmp.ne.s32.totalorder %s257, %s258
    %p270 = scmp.eq.s32.totalorder %s23, 1
    %p271 = por %p269, %p270
    %p273 = scmp.ne.s32.totalorder %s258, %s272
    %p274 = scmp.eq.s32.totalorder %s23, 0
    %p275 = por %p273, %p274
    %s276 = ssub.s32 %s17, %s24
    %p277 = scmp.eq.s32.totalorder %s276, 0
    %s279 = sadd.s32 %s278, 1
    %s280 = scalar_select %p277, %s278, %s279
    %p283 = pneg %p277
    %p284 = scmp.eq.s32.totalorder %s17, 1
    %p285 = por %p283, %p284
    %p286 = scmp.ne.s32.totalorder %s278, %s281
    %p287 = scmp.eq.s32.totalorder %s17, 0
    %p288 = por %p286, %p287
    %p289 = scmp.ne.s32.totalorder %s278, %s281
    %p290 = scmp.eq.s32.totalorder %s22, 1
    %p291 = por %p289, %p290
    %p292 = scmp.ne.s32.totalorder %s281, %s282
    %p293 = scmp.eq.s32.totalorder %s22, 0
    %p294 = por %p292, %p293
    %p295 = scmp.ne.s32.totalorder %s281, %s282
    %p296 = scmp.eq.s32.totalorder %s23, 1
    %p297 = por %p295, %p296
    %p299 = scmp.ne.s32.totalorder %s282, %s298
    %p300 = scmp.eq.s32.totalorder %s23, 0
    %p301 = por %p299, %p300
    %p302 = scmp.le.s32.totalorder 1, %s17
    %p303 = scmp.lt.s32.totalorder %s17, 3
    %p304 = pnand %p302, %p303
    %p305 = pneg %p304
    // Predicated region
    $region9: #{_decoder_forward.1} parent=5 // pred_check
      _
    $region10: #{_decoder_forward.1} parent=5 // pred_check_branch
      %307 = sbr.rel (%p304) target = $region12
    $region11: #{_decoder_forward.1} parent=5 // pred_region
      %s308 = ssub.s32 %s17, 1
      // Predicated region
      $region13: #{_decoder_forward.1} parent=11 // pred_check
        %p309 = pneg %p142
      $region14: #{_decoder_forward.1} parent=11 // pred_check_branch
        %311 = sbr.rel (%p309) target = $region16
      $region15: #{_decoder_forward.1} parent=11 // pred_region
        _
      $region16: #{_decoder_forward.1} parent=11 // pred_fallthru
        _
      // Predicated region
      $region17: #{_decoder_forward.1} parent=11 // pred_check
        %p312 = pneg %p163
      $region18: #{_decoder_forward.1} parent=11 // pred_check_branch
        %314 = sbr.rel (%p312) target = $region20
      $region19: #{_decoder_forward.1} parent=11 // pred_region
        _
      $region20: #{_decoder_forward.1} parent=11 // pred_fallthru
        _
      // Predicated region
      $region21: #{_decoder_forward.1} parent=11 // pred_check
        %p315 = pneg %p184
      $region22: #{_decoder_forward.1} parent=11 // pred_check_branch
        %317 = sbr.rel (%p315) target = $region24
      $region23: #{_decoder_forward.1} parent=11 // pred_region
        _
      $region24: #{_decoder_forward.1} parent=11 // pred_fallthru
        _
      // Predicated region
      $region25: #{_decoder_forward.1} parent=11 // pred_check
        %p318 = pneg %p205
      $region26: #{_decoder_forward.1} parent=11 // pred_check_branch
        %320 = sbr.rel (%p318) target = $region28
      $region27: #{_decoder_forward.1} parent=11 // pred_region
        _
      $region28: #{_decoder_forward.1} parent=11 // pred_fallthru
        _
      // Predicated region
      $region29: #{_decoder_forward.1} parent=11 // pred_check
        %p321 = pneg %p226
      $region30: #{_decoder_forward.1} parent=11 // pred_check_branch
        %323 = sbr.rel (%p321) target = $region32
      $region31: #{_decoder_forward.1} parent=11 // pred_region
        _
      $region32: #{_decoder_forward.1} parent=11 // pred_fallthru
        _
      // Predicated region
      $region33: #{_decoder_forward.1} parent=11 // pred_check
        %p324 = pneg %p247
      $region34: #{_decoder_forward.1} parent=11 // pred_check_branch
        %326 = sbr.rel (%p324) target = $region36
      $region35: #{_decoder_forward.1} parent=11 // pred_region
        _
      $region36: #{_decoder_forward.1} parent=11 // pred_fallthru
        _
      // Predicated region
      $region37: #{_decoder_forward.1} parent=11 // pred_check
        %p327 = pneg %p268
      $region38: #{_decoder_forward.1} parent=11 // pred_check_branch
        %329 = sbr.rel (%p327) target = $region40
      $region39: #{_decoder_forward.1} parent=11 // pred_region
        _
      $region40: #{_decoder_forward.1} parent=11 // pred_fallthru
        _
    $region12: #{_decoder_forward.1} parent=5 // pred_fallthru
      _
    %p330 = scmp.lt.s32.totalorder %s17, 2
    // Predicated region
    $region41: #{_decoder_forward.1} parent=5 // pred_check
      %p331 = pneg %p330
    $region42: #{_decoder_forward.1} parent=5 // pred_check_branch
      %333 = sbr.rel (%p331) target = $region44
    $region43: #{_decoder_forward.1} parent=5 // pred_region
      // Predicated region
      $region45: #{_decoder_forward.1} parent=43 // pred_check
        %p334 = pneg %p37
      $region46: #{_decoder_forward.1} parent=43 // pred_check_branch
        %336 = sbr.rel (%p334) target = $region48
      $region47: #{_decoder_forward.1} parent=43 // pred_region
        %p337 = scmp.lt.s32.totalorder %s17, 1
        %s338 = scalar_select %p337, %s17, 1
        %s339 = smul.addr %s338, 8
        %s340 = scalar_lea.vmem %s0, %s339
      $region48: #{_decoder_forward.1} parent=43 // pred_fallthru
        _
      // Predicated region
      $region49: #{_decoder_forward.1} parent=43 // pred_check
        %p341 = pneg %p63
      $region50: #{_decoder_forward.1} parent=43 // pred_check_branch
        %343 = sbr.rel (%p341) target = $region52
      $region51: #{_decoder_forward.1} parent=43 // pred_region
        %p344 = scmp.lt.s32.totalorder %s17, 1
        %s345 = scalar_select %p344, %s17, 1
        %s346 = smul.addr %s345, 8
        %s347 = scalar_lea.vmem %s1, %s346
      $region52: #{_decoder_forward.1} parent=43 // pred_fallthru
        _
      // Predicated region
      $region53: #{_decoder_forward.1} parent=43 // pred_check
        %p348 = pneg %p89
      $region54: #{_decoder_forward.1} parent=43 // pred_check_branch
        %350 = sbr.rel (%p348) target = $region56
      $region55: #{_decoder_forward.1} parent=43 // pred_region
        %p351 = scmp.lt.s32.totalorder %s17, 1
        %s352 = scalar_select %p351, %s17, 1
        %s353 = smul.addr %s352, 8
        %s354 = scalar_lea.vmem %s2, %s353
      $region56: #{_decoder_forward.1} parent=43 // pred_fallthru
        _
      // Predicated region
      $region57: #{_decoder_forward.1} parent=43 // pred_check
        %p355 = pneg %p115
      $region58: #{_decoder_forward.1} parent=43 // pred_check_branch
        %357 = sbr.rel (%p355) target = $region60
      $region59: #{_decoder_forward.1} parent=43 // pred_region
        %p358 = scmp.lt.s32.totalorder %s17, 1
        %s359 = scalar_select %p358, %s17, 1
        %s360 = smul.addr %s359, 3
        %s361 = smul.addr %s360, 8
        %s362 = scalar_lea.vmem %s3, %s361
      $region60: #{_decoder_forward.1} parent=43 // pred_fallthru
        _
    $region44: #{_decoder_forward.1} parent=5 // pred_fallthru
      _
    %p363 = scmp.le.s32.totalorder 1, %s17
    %p364 = scmp.lt.s32.totalorder %s17, 3
    %p365 = pnand %p363, %p364
    %p366 = pneg %p365
    // Predicated region
    $region61: #{_decoder_forward.1} parent=5 // pred_check
      _
    $region62: #{_decoder_forward.1} parent=5 // pred_check_branch
      %368 = sbr.rel (%p365) target = $region64
    $region63: #{_decoder_forward.1} parent=5 // pred_region
      %s369 = ssub.s32 %s17, 1
      %p370 = scmp.lt.s32.totalorder %s22, 1
      %s371 = scalar_select %p370, %s22, 1
      %s372 = smul.addr %s371, 8
      %s373 = scalar_lea.vmem %s0, %s372
      %p374 = pneg %p43
      %p375 = pneg %p40
      %p376 = scmp.lt.s32.totalorder %s22, 1
      %s377 = scalar_select %p376, %s22, 1
      %s378 = smul.addr %s377, 8
      %s379 = scalar_lea.vmem %s1, %s378
      %p380 = pneg %p69
      %p381 = pneg %p66
      %p382 = scmp.lt.s32.totalorder %s22, 1
      %s383 = scalar_select %p382, %s22, 1
      %s384 = smul.addr %s383, 8
      %s385 = scalar_lea.vmem %s2, %s384
      %p386 = pneg %p95
      %p387 = pneg %p92
      %p388 = scmp.lt.s32.totalorder %s22, 1
      %s389 = scalar_select %p388, %s22, 1
      %s390 = smul.addr %s389, 3
      %s391 = smul.addr %s390, 8
      %s392 = scalar_lea.vmem %s3, %s391
      %p393 = pneg %p121
      %p394 = pneg %p118
      %p395 = pneg %p142
      %p396 = pneg %p139
      %p397 = pneg %p163
      %p398 = pneg %p160
      %p399 = pneg %p184
      %p400 = pneg %p181
      %p401 = pneg %p205
      %p402 = pneg %p202
      %p403 = pneg %p226
      %p404 = pneg %p223
      %p405 = pneg %p247
      %p406 = pneg %p244
      %p407 = pneg %p268
      %p408 = pneg %p265
      %p409 = pneg %p294
      %p410 = pneg %p291
      %p411 = scmp.lt.s32.totalorder %s22, 1
      %s412 = scalar_select %p411, %s22, 1
      %s413 = smul.addr %s412, 2
      %s414 = smul.addr %s413, 2
      %s415 = scalar_lea.vmem %s11, %s414
      %p416 = scmp.lt.s32.totalorder %s22, 1
      %s417 = scalar_select %p416, %s22, 1
      %s418 = smul.addr %s417, 8
      %s419 = scalar_lea.vmem %s0, %s418
      %p420 = scmp.lt.s32.totalorder %s22, 1
      %s421 = scalar_select %p420, %s22, 1
      %s422 = smul.addr %s421, 8
      %s423 = scalar_lea.vmem %s1, %s422
      %p424 = scmp.lt.s32.totalorder %s22, 1
      %s425 = scalar_select %p424, %s22, 1
      %s426 = smul.addr %s425, 8
      %s427 = scalar_lea.vmem %s2, %s426
      %p428 = scmp.lt.s32.totalorder %s22, 1
      %s429 = scalar_select %p428, %s22, 1
      %s430 = smul.addr %s429, 3
      %s431 = smul.addr %s430, 8
      %s432 = scalar_lea.vmem %s3, %s431
      %p433 = scmp.lt.s32.totalorder %s22, 1
      %s434 = scalar_select %p433, %s22, 1
      %s435 = smul.addr %s434, 2
      %s436 = smul.addr %s435, 2
      %s437 = scalar_lea.vmem %s11, %s436
      %v439 = vld [vmem:[%s8] sm:$0xf]
      %v440 = vld [vmem:[%s9] sm:$0xff]
      %v441 = vld [vmem:[%s423] sm:$0xff]
      %v442 = vld [vmem:[%s419] sm:$0xff]
      %v443 = vld [vmem:[%s4] sm:$0xf]
      %vm444 = vcmask 31744
      %v446 = vsel %vm444, %v442, 0
      %vm448 = vcmask 1043456
      %v450 = vsel %vm448, %v443, 0
      %452 = vmatprep.subr.mxu0 0.0
      %453 = vmatpush1.msra.mxu0 %v450
      %454 = vmatprep.subr.mxu0 0.0
      %455 = vmatpush1.msra.mxu0 0.0
      %456 = vmatprep.subr.mxu0 0.0
      %457 = vmatpush1.msra.mxu0 0.0
      %458 = vmatprep.subr.mxu0 0.0
      %459 = vmatpush1.msra.mxu0 0.0
      %460 = vmatprep.subr.mxu0 0.0
      %461 = vmatpush1.msra.mxu0 0.0
      %462 = vmatprep.subr.mxu0 0.0
      %463 = vmatpush1.msra.mxu0 0.0
      %464 = vmatprep.subr.mxu0 0.0
      %465 = vmatpush1.msra.mxu0 0.0
      %466 = vmatprep.subr.mxu0 0.0
      %467 = vmatpush1.msra.mxu0 0.0
      %468 = vmatprep.subr.mxu0 0.0
      %469 = vmatpush1.msra.mxu0 0.0
      %470 = vmatprep.subr.mxu0 0.0
      %471 = vmatpush1.msra.mxu0 0.0
      %472 = vmatprep.subr.mxu0 0.0
      %473 = vmatpush1.msra.mxu0 0.0
      %474 = vmatprep.subr.mxu0 0.0
      %475 = vmatpush1.msra.mxu0 0.0
      %476 = vmatprep.subr.mxu0 0.0
      %477 = vmatpush1.msra.mxu0 0.0
      %478 = vmatprep.subr.mxu0 0.0
      %479 = vmatpush1.msra.mxu0 0.0
      %480 = vmatprep.subr.mxu0 0.0
      %481 = vmatpush1.msra.mxu0 0.0
      %482 = vmatprep.subr.mxu0 0.0
      %483 = vmatpush1.msra.mxu0 0.0
      %484 = vmatprep.subr.mxu0 0.0
      %485 = vmatpush1.msra.mxu0 0.0
      %486 = vmatprep.subr.mxu0 0.0
      %487 = vmatpush1.msra.mxu0 0.0
      %488 = vmatprep.subr.mxu0 0.0
      %489 = vmatpush1.msra.mxu0 0.0
      %490 = vmatprep.subr.mxu0 0.0
      %491 = vmatpush1.msra.mxu0 0.0
      %492 = vmatprep.subr.mxu0 0.0
      %493 = vmatpush1.msra.mxu0 0.0
      %494 = vmatprep.subr.mxu0 0.0
      %495 = vmatpush1.msra.mxu0 0.0
      %496 = vmatprep.subr.mxu0 0.0
      %497 = vmatpush1.msra.mxu0 0.0
      %498 = vmatprep.subr.mxu0 0.0
      %499 = vmatpush1.msra.mxu0 0.0
      %500 = vmatprep.subr.mxu0 0.0
      %501 = vmatpush1.msra.mxu0 0.0
      %502 = vmatprep.subr.mxu0 0.0
      %503 = vmatpush1.msra.mxu0 0.0
      %504 = vmatprep.subr.mxu0 0.0
      %505 = vmatpush1.msra.mxu0 0.0
      %506 = vmatprep.subr.mxu0 0.0
      %507 = vmatpush1.msra.mxu0 0.0
      %508 = vmatprep.subr.mxu0 0.0
      %509 = vmatpush1.msra.mxu0 0.0
      %510 = vmatprep.subr.mxu0 0.0
      %511 = vmatpush1.msra.mxu0 0.0
      %512 = vmatprep.subr.mxu0 0.0
      %513 = vmatpush1.msra.mxu0 0.0
      %514 = vmatprep.subr.mxu0 0.0
      %515 = vmatpush1.msra.mxu0 0.0
      %516 = vmatprep.mubr.f32.mxu0 0.0
      %517 = vmatmul.mubr.f32.gmra.mrb[0].mxu0 %v446
      %v518 = vpop.f32.mrb[0].mxu0
      %v519 = vadd.f32 0.0, %v518
      %v520 = vpop.f32.mrb[0].mxu0
      %521 = vdwg.mxu0
      %v522 = vadd.f32 %v441, %v519
      %524 = vrot.lane.b32.xlu0 %v522, 127
      %v525 = vpop.permute.xlu0 %524
      %527 = vrot.lane.b32.xlu0 %v522, 126
      %v528 = vpop.permute.xlu0 %527
      %530 = vrot.lane.b32.xlu0 %v522, 122
      %v531 = vpop.permute.xlu0 %530
      %533 = vrot.lane.b32.xlu0 %v522, 121
      %v534 = vpop.permute.xlu0 %533
      %536 = vrot.lane.b32.xlu0 %v522, 120
      %v537 = vpop.permute.xlu0 %536
      %539 = vrot.lane.b32.xlu0 %v522, 116
      %v540 = vpop.permute.xlu0 %539
      %542 = vrot.lane.b32.xlu0 %v522, 115
      %v543 = vpop.permute.xlu0 %542
      %545 = vrot.lane.b32.xlu0 %v522, 114
      %v546 = vpop.permute.xlu0 %545
      %v548 = vpack.c.bf16 %v525, %v522
      %v549 = vpack.c.bf16 %v531, %v528
      %v550 = vpack.c.bf16 %v537, %v534
      %v551 = vpack.c.bf16 %v543, %v540
      %v552 = vpack.c.bf16 %v546, %v546
      %554 = vset.pattern.permute.xlu0 0
      %555 = vperm.xlu0 %554, %v440
      %v556 = vpop.permute.xlu0 %555
      %vm558 = vcmask 588800
      %v560 = vsel %vm558, %v439, 0
      %v563 = vsel %vm448, %v552, 0
      %565 = vmatprep.subr.bf16.mxu0 0
      %566 = vmatpush1.bf16.msra.mxu0 %v548
      %567 = vmatprep.subr.bf16.mxu0 0
      %568 = vmatpush1.bf16.msra.mxu0 %v549
      %569 = vmatprep.subr.bf16.mxu0 0
      %570 = vmatpush1.bf16.msra.mxu0 %v550
      %571 = vmatprep.subr.bf16.mxu0 0
      %572 = vmatpush1.bf16.msra.mxu0 %v551
      %573 = vmatprep.subr.bf16.mxu0 0
      %574 = vmatpush1.bf16.msra.mxu0 %v563
      %575 = vmatprep.subr.bf16.mxu0 0
      %576 = vmatpush1.bf16.msra.mxu0 0
      %577 = vmatprep.subr.bf16.mxu0 0
      %578 = vmatpush1.bf16.msra.mxu0 0
      %579 = vmatprep.subr.bf16.mxu0 0
      %580 = vmatpush1.bf16.msra.mxu0 0
      %581 = vmatprep.subr.bf16.mxu0 0
      %582 = vmatpush1.bf16.msra.mxu0 0
      %583 = vmatprep.subr.bf16.mxu0 0
      %584 = vmatpush1.bf16.msra.mxu0 0
      %585 = vmatprep.subr.bf16.mxu0 0
      %586 = vmatpush1.bf16.msra.mxu0 0
      %587 = vmatprep.subr.bf16.mxu0 0
      %588 = vmatpush1.bf16.msra.mxu0 0
      %589 = vmatprep.subr.bf16.mxu0 0
      %590 = vmatpush1.bf16.msra.mxu0 0
      %591 = vmatprep.subr.bf16.mxu0 0
      %592 = vmatpush1.bf16.msra.mxu0 0
      %593 = vmatprep.subr.bf16.mxu0 0
      %594 = vmatpush1.bf16.msra.mxu0 0
      %595 = vmatprep.subr.bf16.mxu0 0
      %596 = vmatpush1.bf16.msra.mxu0 0
      %597 = vmatprep.mubr.bf16.mxu0 0
      %598 = vmatmul.mubr.bf16.gmra.mrb[0].mxu0 %v560
      %v599 = vpop.f32.mrb[0].mxu0
      %v600 = vadd.f32 %v556, %v599
      %v601 = vpop.f32.mrb[0].mxu0
      %v602 = vpop.f32.mrb[0].mxu0
      %v603 = vpop.f32.mrb[0].mxu0
      %604 = vdwg.mxu0
      %v605 = vmax.f32 %v600, 0.0
      %v606 = vld [vmem:[%s427] sm:$0xff]
      %v607 = vld [vmem:[%s5] sm:$0xff]
      %v608 = vld [vmem:[%s5 + $0x8] sm:$0xff]
      %v609 = vld [vmem:[%s5 + $0x10] sm:$0xff]
      %v610 = vld [vmem:[%s5 + $0x18] sm:$0xff]
      %v611 = vld [vmem:[%s5 + $0x20] sm:$0xf]
      %vm612 = vcmask 293888
      %v614 = vsel %vm612, %v605, 0
      %v617 = vsel %vm448, %v611, 0
      %619 = vmatprep.subr.mxu0 0.0
      %620 = vmatpush1.msra.mxu0 %v607
      %621 = vmatprep.subr.mxu0 0.0
      %622 = vmatpush1.msra.mxu0 %v608
      %623 = vmatprep.subr.mxu0 0.0
      %624 = vmatpush1.msra.mxu0 %v609
      %625 = vmatprep.subr.mxu0 0.0
      %626 = vmatpush1.msra.mxu0 %v610
      %627 = vmatprep.subr.mxu0 0.0
      %628 = vmatpush1.msra.mxu0 %v617
      %629 = vmatprep.subr.mxu0 0.0
      %630 = vmatpush1.msra.mxu0 0.0
      %631 = vmatprep.subr.mxu0 0.0
      %632 = vmatpush1.msra.mxu0 0.0
      %633 = vmatprep.subr.mxu0 0.0
      %634 = vmatpush1.msra.mxu0 0.0
      %635 = vmatprep.subr.mxu0 0.0
      %636 = vmatpush1.msra.mxu0 0.0
      %637 = vmatprep.subr.mxu0 0.0
      %638 = vmatpush1.msra.mxu0 0.0
      %639 = vmatprep.subr.mxu0 0.0
      %640 = vmatpush1.msra.mxu0 0.0
      %641 = vmatprep.subr.mxu0 0.0
      %642 = vmatpush1.msra.mxu0 0.0
      %643 = vmatprep.subr.mxu0 0.0
      %644 = vmatpush1.msra.mxu0 0.0
      %645 = vmatprep.subr.mxu0 0.0
      %646 = vmatpush1.msra.mxu0 0.0
      %647 = vmatprep.subr.mxu0 0.0
      %648 = vmatpush1.msra.mxu0 0.0
      %649 = vmatprep.subr.mxu0 0.0
      %650 = vmatpush1.msra.mxu0 0.0
      %651 = vmatprep.subr.mxu0 0.0
      %652 = vmatpush1.msra.mxu0 0.0
      %653 = vmatprep.subr.mxu0 0.0
      %654 = vmatpush1.msra.mxu0 0.0
      %655 = vmatprep.subr.mxu0 0.0
      %656 = vmatpush1.msra.mxu0 0.0
      %657 = vmatprep.subr.mxu0 0.0
      %658 = vmatpush1.msra.mxu0 0.0
      %659 = vmatprep.subr.mxu0 0.0
      %660 = vmatpush1.msra.mxu0 0.0
      %661 = vmatprep.subr.mxu0 0.0
      %662 = vmatpush1.msra.mxu0 0.0
      %663 = vmatprep.subr.mxu0 0.0
      %664 = vmatpush1.msra.mxu0 0.0
      %665 = vmatprep.subr.mxu0 0.0
      %666 = vmatpush1.msra.mxu0 0.0
      %667 = vmatprep.subr.mxu0 0.0
      %668 = vmatpush1.msra.mxu0 0.0
      %669 = vmatprep.subr.mxu0 0.0
      %670 = vmatpush1.msra.mxu0 0.0
      %671 = vmatprep.subr.mxu0 0.0
      %672 = vmatpush1.msra.mxu0 0.0
      %673 = vmatprep.subr.mxu0 0.0
      %674 = vmatpush1.msra.mxu0 0.0
      %675 = vmatprep.subr.mxu0 0.0
      %676 = vmatpush1.msra.mxu0 0.0
      %677 = vmatprep.subr.mxu0 0.0
      %678 = vmatpush1.msra.mxu0 0.0
      %679 = vmatprep.subr.mxu0 0.0
      %680 = vmatpush1.msra.mxu0 0.0
      %681 = vmatprep.subr.mxu0 0.0
      %682 = vmatpush1.msra.mxu0 0.0
      %683 = vmatprep.mubr.f32.mxu0 0.0
      %684 = vmatmul.mubr.f32.gmra.mrb[0].mxu0 %v614
      %v685 = vpop.f32.mrb[0].mxu0
      %v686 = vadd.f32 0.0, %v685
      %v687 = vpop.f32.mrb[0].mxu0
      %688 = vdwg.mxu0
      %v689 = vadd.f32 %v606, %v686
      %691 = vrot.lane.b32.xlu0 %v689, 127
      %v692 = vpop.permute.xlu0 %691
      %694 = vrot.lane.b32.xlu0 %v689, 126
      %v695 = vpop.permute.xlu0 %694
      %697 = vrot.lane.b32.xlu0 %v689, 118
      %v698 = vpop.permute.xlu0 %697
      %700 = vrot.lane.b32.xlu0 %v689, 117
      %v701 = vpop.permute.xlu0 %700
      %703 = vrot.lane.b32.xlu0 %v689, 116
      %v704 = vpop.permute.xlu0 %703
      %706 = vrot.lane.b32.xlu0 %v689, 108
      %v707 = vpop.permute.xlu0 %706
      %709 = vrot.lane.b32.xlu0 %v689, 107
      %v710 = vpop.permute.xlu0 %709
      %712 = vrot.lane.b32.xlu0 %v689, 106
      %v713 = vpop.permute.xlu0 %712
      %v715 = vpack.c.bf16 %v692, %v689
      %v716 = vpack.c.bf16 %v698, %v695
      %v717 = vpack.c.bf16 %v704, %v701
      %v718 = vpack.c.bf16 %v710, %v707
      %v719 = vpack.c.bf16 %v713, %v713
      %v721 = vsel %vm448, %v719, 0
      %723 = vmatprep.subr.bf16.mxu0 0
      %724 = vmatpush1.bf16.msra.mxu0 %v715
      %725 = vmatprep.subr.bf16.mxu0 0
      %726 = vmatpush1.bf16.msra.mxu0 %v716
      %727 = vmatprep.subr.bf16.mxu0 0
      %728 = vmatpush1.bf16.msra.mxu0 %v717
      %729 = vmatprep.subr.bf16.mxu0 0
      %730 = vmatpush1.bf16.msra.mxu0 %v718
      %731 = vmatprep.subr.bf16.mxu0 0
      %732 = vmatpush1.bf16.msra.mxu0 %v721
      %733 = vmatprep.subr.bf16.mxu0 0
      %734 = vmatpush1.bf16.msra.mxu0 0
      %735 = vmatprep.subr.bf16.mxu0 0
      %736 = vmatpush1.bf16.msra.mxu0 0
      %737 = vmatprep.subr.bf16.mxu0 0
      %738 = vmatpush1.bf16.msra.mxu0 0
      %739 = vmatprep.subr.bf16.mxu0 0
      %740 = vmatpush1.bf16.msra.mxu0 0
      %741 = vmatprep.subr.bf16.mxu0 0
      %742 = vmatpush1.bf16.msra.mxu0 0
      %743 = vmatprep.subr.bf16.mxu0 0
      %744 = vmatpush1.bf16.msra.mxu0 0
      %745 = vmatprep.subr.bf16.mxu0 0
      %746 = vmatpush1.bf16.msra.mxu0 0
      %747 = vmatprep.subr.bf16.mxu0 0
      %748 = vmatpush1.bf16.msra.mxu0 0
      %749 = vmatprep.subr.bf16.mxu0 0
      %750 = vmatpush1.bf16.msra.mxu0 0
      %751 = vmatprep.subr.bf16.mxu0 0
      %752 = vmatpush1.bf16.msra.mxu0 0
      %753 = vmatprep.subr.bf16.mxu0 0
      %754 = vmatpush1.bf16.msra.mxu0 0
      %755 = vmatprep.mubr.bf16.mxu0 0
      %756 = vmatmul.mubr.bf16.gmra.mrb[0].mxu0 %v560
      %v757 = vpop.f32.mrb[0].mxu0
      %v758 = vadd.f32 %v556, %v757
      %v759 = vpop.f32.mrb[0].mxu0
      %v760 = vpop.f32.mrb[0].mxu0
      %v761 = vpop.f32.mrb[0].mxu0
      %762 = vdwg.mxu0
      %v763 = vmax.f32 %v758, 0.0
      %v764 = vld [vmem:[%s432] sm:$0xff]
      %v765 = vld [vmem:[%s432 + $0x8] sm:$0xff]
      %v766 = vld [vmem:[%s432 + $0x10] sm:$0xff]
      %v767 = vld [vmem:[%s6] sm:$0xff]
      %v768 = vld [vmem:[%s6 + $0x8] sm:$0xff]
      %v769 = vld [vmem:[%s6 + $0x10] sm:$0xff]
      %v770 = vld [vmem:[%s6 + $0x18] sm:$0xff]
      %v771 = vld [vmem:[%s6 + $0x20] sm:$0xff]
      %v772 = vld [vmem:[%s6 + $0x28] sm:$0xff]
      %v773 = vld [vmem:[%s6 + $0x30] sm:$0xff]
      %v774 = vld [vmem:[%s6 + $0x38] sm:$0xff]
      %v775 = vld [vmem:[%s6 + $0x40] sm:$0xff]
      %v776 = vld [vmem:[%s6 + $0x48] sm:$0xff]
      %v777 = vld [vmem:[%s6 + $0x50] sm:$0xff]
      %v778 = vld [vmem:[%s6 + $0x58] sm:$0xff]
      %v779 = vld [vmem:[%s6 + $0x60] sm:$0xff]
      %v780 = vld [vmem:[%s6 + $0x68] sm:$0xff]
      %v781 = vld [vmem:[%s6 + $0x70] sm:$0xff]
      %v782 = vld [vmem:[%s6 + $0x78] sm:$0xff]
      %v783 = vld [vmem:[%s6 + $0x80] sm:$0xff]
      %v784 = vld [vmem:[%s6 + $0x88] sm:$0xff]
      %v785 = vld [vmem:[%s6 + $0x90] sm:$0xff]
      %v786 = vld [vmem:[%s6 + $0x98] sm:$0xff]
      %v787 = vld [vmem:[%s6 + $0xa0] sm:$0xff]
      %v788 = vld [vmem:[%s6 + $0xa8] sm:$0xff]
      %v789 = vld [vmem:[%s6 + $0xb0] sm:$0xff]
      %v790 = vld [vmem:[%s6 + $0xb8] sm:$0xff]
      %v791 = vld [vmem:[%s6 + $0xc0] sm:$0xff]
      %v792 = vld [vmem:[%s6 + $0xc8] sm:$0xff]
      %v793 = vld [vmem:[%s6 + $0xd0] sm:$0xff]
      %v794 = vld [vmem:[%s6 + $0xd8] sm:$0xff]
      %v795 = vld [vmem:[%s6 + $0xe0] sm:$0xff]
      %v796 = vld [vmem:[%s6 + $0xe8] sm:$0xff]
      %v797 = vld [vmem:[%s6 + $0xf0] sm:$0xff]
      %v798 = vld [vmem:[%s6 + $0xf8] sm:$0xff]
      %v799 = vld [vmem:[%s6 + $0x100] sm:$0xff]
      %v800 = vld [vmem:[%s6 + $0x108] sm:$0xff]
      %v801 = vld [vmem:[%s6 + $0x110] sm:$0xff]
      %v802 = vld [vmem:[%s6 + $0x118] sm:$0xff]
      %v803 = vld [vmem:[%s6 + $0x120] sm:$0xf]
      %v804 = vld [vmem:[%s6 + $0x128] sm:$0xf]
      %v805 = vld [vmem:[%s6 + $0x130] sm:$0xf]
      %vm806 = vcmask 818176
      %v808 = vsel %vm806, %v763, 0
      %v811 = vsel %vm448, %v803, 0
      %v814 = vsel %vm448, %v804, 0
      %v817 = vsel %vm448, %v805, 0
      %819 = vmatprep.subr.mxu0 %v768
      %820 = vmatpush1.msra.mxu0 %v767
      %821 = vmatprep.subr.mxu0 %v771
      %822 = vmatpush1.msra.mxu0 %v770
      %823 = vmatprep.subr.mxu0 %v774
      %824 = vmatpush1.msra.mxu0 %v773
      %825 = vmatprep.subr.mxu0 %v777
      %826 = vmatpush1.msra.mxu0 %v776
      %827 = vmatprep.subr.mxu0 %v780
      %828 = vmatpush1.msra.mxu0 %v779
      %829 = vmatprep.subr.mxu0 %v783
      %830 = vmatpush1.msra.mxu0 %v782
      %831 = vmatprep.subr.mxu0 %v786
      %832 = vmatpush1.msra.mxu0 %v785
      %833 = vmatprep.subr.mxu0 %v789
      %834 = vmatpush1.msra.mxu0 %v788
      %835 = vmatprep.subr.mxu0 %v792
      %836 = vmatpush1.msra.mxu0 %v791
      %837 = vmatprep.subr.mxu0 %v795
      %838 = vmatpush1.msra.mxu0 %v794
      %839 = vmatprep.subr.mxu0 %v798
      %840 = vmatpush1.msra.mxu0 %v797
      %841 = vmatprep.subr.mxu0 %v801
      %842 = vmatpush1.msra.mxu0 %v800
      %843 = vmatprep.subr.mxu0 %v814
      %844 = vmatpush1.msra.mxu0 %v811
      %845 = vmatprep.subr.mxu0 0.0
      %846 = vmatpush1.msra.mxu0 0.0
      %847 = vmatprep.subr.mxu0 0.0
      %848 = vmatpush1.msra.mxu0 0.0
      %849 = vmatprep.subr.mxu0 0.0
      %850 = vmatpush1.msra.mxu0 0.0
      %851 = vmatprep.subr.mxu0 0.0
      %852 = vmatpush1.msra.mxu0 0.0
      %853 = vmatprep.subr.mxu0 0.0
      %854 = vmatpush1.msra.mxu0 0.0
      %855 = vmatprep.subr.mxu0 0.0
      %856 = vmatpush1.msra.mxu0 0.0
      %857 = vmatprep.subr.mxu0 0.0
      %858 = vmatpush1.msra.mxu0 0.0
      %859 = vmatprep.subr.mxu0 0.0
      %860 = vmatpush1.msra.mxu0 0.0
      %861 = vmatprep.subr.mxu0 0.0
      %862 = vmatpush1.msra.mxu0 0.0
      %863 = vmatprep.subr.mxu0 0.0
      %864 = vmatpush1.msra.mxu0 0.0
      %865 = vmatprep.subr.mxu0 0.0
      %866 = vmatpush1.msra.mxu0 0.0
      %867 = vmatprep.subr.mxu0 0.0
      %868 = vmatpush1.msra.mxu0 0.0
      %869 = vmatprep.subr.mxu0 0.0
      %870 = vmatpush1.msra.mxu0 0.0
      %871 = vmatprep.subr.mxu0 0.0
      %872 = vmatpush1.msra.mxu0 0.0
      %873 = vmatprep.subr.mxu0 0.0
      %874 = vmatpush1.msra.mxu0 0.0
      %875 = vmatprep.subr.mxu0 0.0
      %876 = vmatpush1.msra.mxu0 0.0
      %877 = vmatprep.subr.mxu0 0.0
      %878 = vmatpush1.msra.mxu0 0.0
      %879 = vmatprep.subr.mxu0 0.0
      %880 = vmatpush1.msra.mxu0 0.0
      %881 = vmatprep.subr.mxu0 0.0
      %882 = vmatpush1.msra.mxu0 0.0
      %883 = vmatprep.mubr.f32.mxu0 0.0
      %884 = vmatmul.mubr.f32.gmra.mrb[0].mxu0 %v808
      %v885 = vpop.f32.mrb[0].mxu0
      %v886 = vadd.f32 0.0, %v885
      %v887 = vpop.f32.mrb[0].mxu0
      %v888 = vadd.f32 0.0, %v887
      %889 = vdwg.mxu0
      %890 = vmatprep.subr.mxu0 0.0
      %891 = vmatpush1.msra.mxu0 %v769
      %892 = vmatprep.subr.mxu0 0.0
      %893 = vmatpush1.msra.mxu0 %v772
      %894 = vmatprep.subr.mxu0 0.0
      %895 = vmatpush1.msra.mxu0 %v775
      %896 = vmatprep.subr.mxu0 0.0
      %897 = vmatpush1.msra.mxu0 %v778
      %898 = vmatprep.subr.mxu0 0.0
      %899 = vmatpush1.msra.mxu0 %v781
      %900 = vmatprep.subr.mxu0 0.0
      %901 = vmatpush1.msra.mxu0 %v784
      %902 = vmatprep.subr.mxu0 0.0
      %903 = vmatpush1.msra.mxu0 %v787
      %904 = vmatprep.subr.mxu0 0.0
      %905 = vmatpush1.msra.mxu0 %v790
      %906 = vmatprep.subr.mxu0 0.0
      %907 = vmatpush1.msra.mxu0 %v793
      %908 = vmatprep.subr.mxu0 0.0
      %909 = vmatpush1.msra.mxu0 %v796
      %910 = vmatprep.subr.mxu0 0.0
      %911 = vmatpush1.msra.mxu0 %v799
      %912 = vmatprep.subr.mxu0 0.0
      %913 = vmatpush1.msra.mxu0 %v802
      %914 = vmatprep.subr.mxu0 0.0
      %915 = vmatpush1.msra.mxu0 %v817
      %916 = vmatprep.subr.mxu0 0.0
      %917 = vmatpush1.msra.mxu0 0.0
      %918 = vmatprep.subr.mxu0 0.0
      %919 = vmatpush1.msra.mxu0 0.0
      %920 = vmatprep.subr.mxu0 0.0
      %921 = vmatpush1.msra.mxu0 0.0
      %922 = vmatprep.subr.mxu0 0.0
      %923 = vmatpush1.msra.mxu0 0.0
      %924 = vmatprep.subr.mxu0 0.0
      %925 = vmatpush1.msra.mxu0 0.0
      %926 = vmatprep.subr.mxu0 0.0
      %927 = vmatpush1.msra.mxu0 0.0
      %928 = vmatprep.subr.mxu0 0.0
      %929 = vmatpush1.msra.mxu0 0.0
      %930 = vmatprep.subr.mxu0 0.0
      %931 = vmatpush1.msra.mxu0 0.0
      %932 = vmatprep.subr.mxu0 0.0
      %933 = vmatpush1.msra.mxu0 0.0
      %934 = vmatprep.subr.mxu0 0.0
      %935 = vmatpush1.msra.mxu0 0.0
      %936 = vmatprep.subr.mxu0 0.0
      %937 = vmatpush1.msra.mxu0 0.0
      %938 = vmatprep.subr.mxu0 0.0
      %939 = vmatpush1.msra.mxu0 0.0
      %940 = vmatprep.subr.mxu0 0.0
      %941 = vmatpush1.msra.mxu0 0.0
      %942 = vmatprep.subr.mxu0 0.0
      %943 = vmatpush1.msra.mxu0 0.0
      %944 = vmatprep.subr.mxu0 0.0
      %945 = vmatpush1.msra.mxu0 0.0
      %946 = vmatprep.subr.mxu0 0.0
      %947 = vmatpush1.msra.mxu0 0.0
      %948 = vmatprep.subr.mxu0 0.0
      %949 = vmatpush1.msra.mxu0 0.0
      %950 = vmatprep.subr.mxu0 0.0
      %951 = vmatpush1.msra.mxu0 0.0
      %952 = vmatprep.subr.mxu0 0.0
      %953 = vmatpush1.msra.mxu0 0.0
      %954 = vmatprep.mubr.f32.mxu0 0.0
      %955 = vmatmul.mubr.f32.gmra.mrb[0].mxu0 %v808
      %v956 = vpop.f32.mrb[0].mxu0
      %v957 = vadd.f32 0.0, %v956
      %v958 = vpop.f32.mrb[0].mxu0
      %959 = vdwg.mxu0
      %v960 = vadd.f32 %v764, %v886
      %v961 = vadd.f32 %v765, %v888
      %v962 = vadd.f32 %v766, %v957
      %966 = vrot.lane.b32.xlu0 %v960, 127
      %v967 = vpop.permute.xlu0 %966
      %968 = vrot.lane.b32.xlu0 %v961, 127
      %v969 = vpop.permute.xlu0 %968
      %970 = vrot.lane.b32.xlu0 %v962, 127
      %v971 = vpop.permute.xlu0 %970
      %vm972 = vcmask 1039360
      %v973 = vsel %vm972, %v967, %v969
      %v974 = vsel %vm972, %v969, %v971
      %978 = vrot.lane.b32.xlu0 %v960, 126
      %v979 = vpop.permute.xlu0 %978
      %980 = vrot.lane.b32.xlu0 %v961, 126
      %v981 = vpop.permute.xlu0 %980
      %982 = vrot.lane.b32.xlu0 %v962, 126
      %v983 = vpop.permute.xlu0 %982
      %vm984 = vcmask 1031168
      %v985 = vsel %vm984, %v979, %v981
      %v986 = vsel %vm984, %v981, %v983
      %990 = vrot.lane.b32.xlu0 %v960, 110
      %v991 = vpop.permute.xlu0 %990
      %992 = vrot.lane.b32.xlu0 %v961, 110
      %v993 = vpop.permute.xlu0 %992
      %994 = vrot.lane.b32.xlu0 %v962, 110
      %v995 = vpop.permute.xlu0 %994
      %vm996 = vcmask 900096
      %v997 = vsel %vm996, %v991, %v993
      %v998 = vsel %vm996, %v993, %v995
      %1002 = vrot.lane.b32.xlu0 %v960, 109
      %v1003 = vpop.permute.xlu0 %1002
      %1004 = vrot.lane.b32.xlu0 %v961, 109
      %v1005 = vpop.permute.xlu0 %1004
      %1006 = vrot.lane.b32.xlu0 %v962, 109
      %v1007 = vpop.permute.xlu0 %1006
      %vm1008 = vcmask 891904
      %v1009 = vsel %vm1008, %v1003, %v1005
      %v1010 = vsel %vm1008, %v1005, %v1007
      %1014 = vrot.lane.b32.xlu0 %v960, 108
      %v1015 = vpop.permute.xlu0 %1014
      %1016 = vrot.lane.b32.xlu0 %v961, 108
      %v1017 = vpop.permute.xlu0 %1016
      %1018 = vrot.lane.b32.xlu0 %v962, 108
      %v1019 = vpop.permute.xlu0 %1018
      %vm1020 = vcmask 883712
      %v1021 = vsel %vm1020, %v1015, %v1017
      %v1022 = vsel %vm1020, %v1017, %v1019
      %1026 = vrot.lane.b32.xlu0 %v960, 92
      %v1027 = vpop.permute.xlu0 %1026
      %1028 = vrot.lane.b32.xlu0 %v961, 92
      %v1029 = vpop.permute.xlu0 %1028
      %1030 = vrot.lane.b32.xlu0 %v962, 92
      %v1031 = vpop.permute.xlu0 %1030
      %vm1032 = vcmask 752640
      %v1033 = vsel %vm1032, %v1027, %v1029
      %v1034 = vsel %vm1032, %v1029, %v1031
      %1038 = vrot.lane.b32.xlu0 %v960, 91
      %v1039 = vpop.permute.xlu0 %1038
      %1040 = vrot.lane.b32.xlu0 %v961, 91
      %v1041 = vpop.permute.xlu0 %1040
      %1042 = vrot.lane.b32.xlu0 %v962, 91
      %v1043 = vpop.permute.xlu0 %1042
      %vm1044 = vcmask 744448
      %v1045 = vsel %vm1044, %v1039, %v1041
      %v1046 = vsel %vm1044, %v1041, %v1043
      %1050 = vrot.lane.b32.xlu0 %v960, 90
      %v1051 = vpop.permute.xlu0 %1050
      %1052 = vrot.lane.b32.xlu0 %v961, 90
      %v1053 = vpop.permute.xlu0 %1052
      %1054 = vrot.lane.b32.xlu0 %v962, 90
      %v1055 = vpop.permute.xlu0 %1054
      %vm1056 = vcmask 736256
      %v1057 = vsel %vm1056, %v1051, %v1053
      %v1058 = vsel %vm1056, %v1053, %v1055
      %v1062 = vpack.c.bf16 %v973, %v960
      %v1063 = vpack.c.bf16 %v974, %v961
      %v1064 = vpack.c.bf16 %v971, %v962
      %v1065 = vpack.c.bf16 %v997, %v985
      %v1066 = vpack.c.bf16 %v998, %v986
      %v1067 = vpack.c.bf16 %v995, %v983
      %v1068 = vpack.c.bf16 %v1021, %v1009
      %v1069 = vpack.c.bf16 %v1022, %v1010
      %v1070 = vpack.c.bf16 %v1019, %v1007
      %v1071 = vpack.c.bf16 %v1045, %v1033
      %v1072 = vpack.c.bf16 %v1046, %v1034
      %v1073 = vpack.c.bf16 %v1043, %v1031
      %v1074 = vpack.c.bf16 %v1057, %v1057
      %v1075 = vpack.c.bf16 %v1058, %v1058
      %v1076 = vpack.c.bf16 %v1055, %v1055
      %v1078 = vsel %vm448, %v1074, 0
      %v1081 = vsel %vm448, %v1075, 0
      %v1084 = vsel %vm448, %v1076, 0
      %1086 = vmatprep.subr.bf16.mxu0 %v1063
      %1087 = vmatpush1.bf16.msra.mxu0 %v1062
      %1088 = vmatprep.subr.bf16.mxu0 %v1066
      %1089 = vmatpush1.bf16.msra.mxu0 %v1065
      %1090 = vmatprep.subr.bf16.mxu0 %v1069
      %1091 = vmatpush1.bf16.msra.mxu0 %v1068
      %1092 = vmatprep.subr.bf16.mxu0 %v1072
      %1093 = vmatpush1.bf16.msra.mxu0 %v1071
      %1094 = vmatprep.subr.bf16.mxu0 %v1081
      %1095 = vmatpush1.bf16.msra.mxu0 %v1078
      %1096 = vmatprep.subr.bf16.mxu0 0
      %1097 = vmatpush1.bf16.msra.mxu0 0
      %1098 = vmatprep.subr.bf16.mxu0 0
      %1099 = vmatpush1.bf16.msra.mxu0 0
      %1100 = vmatprep.subr.bf16.mxu0 0
      %1101 = vmatpush1.bf16.msra.mxu0 0
      %1102 = vmatprep.subr.bf16.mxu0 0
      %1103 = vmatpush1.bf16.msra.mxu0 0
      %1104 = vmatprep.subr.bf16.mxu0 0
      %1105 = vmatpush1.bf16.msra.mxu0 0
      %1106 = vmatprep.subr.bf16.mxu0 0
      %1107 = vmatpush1.bf16.msra.mxu0 0
      %1108 = vmatprep.subr.bf16.mxu0 0
      %1109 = vmatpush1.bf16.msra.mxu0 0
      %1110 = vmatprep.subr.bf16.mxu0 0
      %1111 = vmatpush1.bf16.msra.mxu0 0
      %1112 = vmatprep.subr.bf16.mxu0 0
      %1113 = vmatpush1.bf16.msra.mxu0 0
      %1114 = vmatprep.subr.bf16.mxu0 0
      %1115 = vmatpush1.bf16.msra.mxu0 0
      %1116 = vmatprep.subr.bf16.mxu0 0
      %1117 = vmatpush1.bf16.msra.mxu0 0
      %1118 = vmatprep.mubr.bf16.mxu0 0
      %1119 = vmatmul.mubr.bf16.gmra.mrb[0].mxu0 %v560
      %v1120 = vpop.f32.mrb[0].mxu0
      %v1121 = vadd.f32 %v556, %v1120
      %v1122 = vpop.f32.mrb[0].mxu0
      %v1123 = vadd.f32 %v556, %v1122
      %v1124 = vpop.f32.mrb[0].mxu0
      %v1125 = vpop.f32.mrb[0].mxu0
      %1126 = vdwg.mxu0
      %1127 = vmatprep.subr.bf16.mxu0 0
      %1128 = vmatpush1.bf16.msra.mxu0 %v1064
      %1129 = vmatprep.subr.bf16.mxu0 0
      %1130 = vmatpush1.bf16.msra.mxu0 %v1067
      %1131 = vmatprep.subr.bf16.mxu0 0
      %1132 = vmatpush1.bf16.msra.mxu0 %v1070
      %1133 = vmatprep.subr.bf16.mxu0 0
      %1134 = vmatpush1.bf16.msra.mxu0 %v1073
      %1135 = vmatprep.subr.bf16.mxu0 0
      %1136 = vmatpush1.bf16.msra.mxu0 %v1084
      %1137 = vmatprep.subr.bf16.mxu0 0
      %1138 = vmatpush1.bf16.msra.mxu0 0
      %1139 = vmatprep.subr.bf16.mxu0 0
      %1140 = vmatpush1.bf16.msra.mxu0 0
      %1141 = vmatprep.subr.bf16.mxu0 0
      %1142 = vmatpush1.bf16.msra.mxu0 0
      %1143 = vmatprep.subr.bf16.mxu0 0
      %1144 = vmatpush1.bf16.msra.mxu0 0
      %1145 = vmatprep.subr.bf16.mxu0 0
      %1146 = vmatpush1.bf16.msra.mxu0 0
      %1147 = vmatprep.subr.bf16.mxu0 0
      %1148 = vmatpush1.bf16.msra.mxu0 0
      %1149 = vmatprep.subr.bf16.mxu0 0
      %1150 = vmatpush1.bf16.msra.mxu0 0
      %1151 = vmatprep.subr.bf16.mxu0 0
      %1152 = vmatpush1.bf16.msra.mxu0 0
      %1153 = vmatprep.subr.bf16.mxu0 0
      %1154 = vmatpush1.bf16.msra.mxu0 0
      %1155 = vmatprep.subr.bf16.mxu0 0
      %1156 = vmatpush1.bf16.msra.mxu0 0
      %1157 = vmatprep.subr.bf16.mxu0 0
      %1158 = vmatpush1.bf16.msra.mxu0 0
      %1159 = vmatprep.mubr.bf16.mxu0 0
      %1160 = vmatmul.mubr.bf16.gmra.mrb[0].mxu0 %v560
      %v1161 = vpop.f32.mrb[0].mxu0
      %v1162 = vadd.f32 %v556, %v1161
      %v1163 = vpop.f32.mrb[0].mxu0
      %v1164 = vpop.f32.mrb[0].mxu0
      %v1165 = vpop.f32.mrb[0].mxu0
      %1166 = vdwg.mxu0
      %v1167 = vmax.f32 %v1121, 0.0
      %v1168 = vmax.f32 %v1123, 0.0
      %v1169 = vmax.f32 %v1162, 0.0
      %v1170 = vld [vmem:[%s10] sm:$0x1]
      %v1171 = vpack.c.bf16 %v1167, %v1167
      %v1172 = vpack.c.bf16 %v1168, %v1168
      %v1173 = vpack.c.bf16 %v1169, %v1169
      %vm1174 = vcmask 64512
      %v1176 = vsel %vm1174, %v1170, 0
      %v1179 = vsel %vm448, %v1171, 0
      %v1182 = vsel %vm448, %v1172, 0
      %v1185 = vsel %vm448, %v1173, 0
      %1187 = vmatprep.subr.bf16.mxu0 %v1182
      %1188 = vmatpush1.bf16.msra.mxu0 %v1179
      %1189 = vmatprep.subr.bf16.mxu0 0
      %1190 = vmatpush1.bf16.msra.mxu0 0
      %1191 = vmatprep.subr.bf16.mxu0 0
      %1192 = vmatpush1.bf16.msra.mxu0 0
      %1193 = vmatprep.subr.bf16.mxu0 0
      %1194 = vmatpush1.bf16.msra.mxu0 0
      %1195 = vmatprep.subr.bf16.mxu0 0
      %1196 = vmatpush1.bf16.msra.mxu0 0
      %1197 = vmatprep.subr.bf16.mxu0 0
      %1198 = vmatpush1.bf16.msra.mxu0 0
      %1199 = vmatprep.subr.bf16.mxu0 0
      %1200 = vmatpush1.bf16.msra.mxu0 0
      %1201 = vmatprep.subr.bf16.mxu0 0
      %1202 = vmatpush1.bf16.msra.mxu0 0
      %1203 = vmatprep.subr.bf16.mxu0 0
      %1204 = vmatpush1.bf16.msra.mxu0 0
      %1205 = vmatprep.subr.bf16.mxu0 0
      %1206 = vmatpush1.bf16.msra.mxu0 0
      %1207 = vmatprep.subr.bf16.mxu0 0
      %1208 = vmatpush1.bf16.msra.mxu0 0
      %1209 = vmatprep.subr.bf16.mxu0 0
      %1210 = vmatpush1.bf16.msra.mxu0 0
      %1211 = vmatprep.subr.bf16.mxu0 0
      %1212 = vmatpush1.bf16.msra.mxu0 0
      %1213 = vmatprep.subr.bf16.mxu0 0
      %1214 = vmatpush1.bf16.msra.mxu0 0
      %1215 = vmatprep.subr.bf16.mxu0 0
      %1216 = vmatpush1.bf16.msra.mxu0 0
      %1217 = vmatprep.subr.bf16.mxu0 0
      %1218 = vmatpush1.bf16.msra.mxu0 0
      %1219 = vmatprep.mubr.bf16.mxu0 0
      %1220 = vmatmul.mubr.bf16.gmra.mrb[0].mxu0 %v1176
      %v1221 = vpop.f32.mrb[0].mxu0
      %v1222 = vadd.f32 0.0, %v1221
      %v1223 = vpop.f32.mrb[0].mxu0
      %v1224 = vadd.f32 0.0, %v1223
      %v1225 = vpop.f32.mrb[0].mxu0
      %v1226 = vpop.f32.mrb[0].mxu0
      %1227 = vdwg.mxu0
      %1228 = vmatprep.subr.bf16.mxu0 0
      %1229 = vmatpush1.bf16.msra.mxu0 %v1185
      %1230 = vmatprep.subr.bf16.mxu0 0
      %1231 = vmatpush1.bf16.msra.mxu0 0
      %1232 = vmatprep.subr.bf16.mxu0 0
      %1233 = vmatpush1.bf16.msra.mxu0 0
      %1234 = vmatprep.subr.bf16.mxu0 0
      %1235 = vmatpush1.bf16.msra.mxu0 0
      %1236 = vmatprep.subr.bf16.mxu0 0
      %1237 = vmatpush1.bf16.msra.mxu0 0
      %1238 = vmatprep.subr.bf16.mxu0 0
      %1239 = vmatpush1.bf16.msra.mxu0 0
      %1240 = vmatprep.subr.bf16.mxu0 0
      %1241 = vmatpush1.bf16.msra.mxu0 0
      %1242 = vmatprep.subr.bf16.mxu0 0
      %1243 = vmatpush1.bf16.msra.mxu0 0
      %1244 = vmatprep.subr.bf16.mxu0 0
      %1245 = vmatpush1.bf16.msra.mxu0 0
      %1246 = vmatprep.subr.bf16.mxu0 0
      %1247 = vmatpush1.bf16.msra.mxu0 0
      %1248 = vmatprep.subr.bf16.mxu0 0
      %1249 = vmatpush1.bf16.msra.mxu0 0
      %1250 = vmatprep.subr.bf16.mxu0 0
      %1251 = vmatpush1.bf16.msra.mxu0 0
      %1252 = vmatprep.subr.bf16.mxu0 0
      %1253 = vmatpush1.bf16.msra.mxu0 0
      %1254 = vmatprep.subr.bf16.mxu0 0
      %1255 = vmatpush1.bf16.msra.mxu0 0
      %1256 = vmatprep.subr.bf16.mxu0 0
      %1257 = vmatpush1.bf16.msra.mxu0 0
      %1258 = vmatprep.subr.bf16.mxu0 0
      %1259 = vmatpush1.bf16.msra.mxu0 0
      %1260 = vmatprep.mubr.bf16.mxu0 0
      %1261 = vmatmul.mubr.bf16.gmra.mrb[0].mxu0 %v1176
      %v1262 = vpop.f32.mrb[0].mxu0
      %v1263 = vadd.f32 0.0, %v1262
      %v1264 = vpop.f32.mrb[0].mxu0
      %v1265 = vpop.f32.mrb[0].mxu0
      %v1266 = vpop.f32.mrb[0].mxu0
      %1267 = vdwg.mxu0
      %v1268 = vld [vmem:[%s7] sm:$0xff]
      %v1269 = vld [vmem:[%s7 + $0x8] sm:$0xff]
      %v1270 = vld [vmem:[%s7 + $0x10] sm:$0xff]
      %v1271 = vld [vmem:[%s7 + $0x18] sm:$0xff]
      %v1272 = vld [vmem:[%s7 + $0x20] sm:$0xff]
      %v1273 = vld [vmem:[%s7 + $0x28] sm:$0xff]
      %v1274 = vld [vmem:[%s7 + $0x30] sm:$0xff]
      %v1275 = vld [vmem:[%s7 + $0x38] sm:$0xff]
      %v1276 = vld [vmem:[%s7 + $0x40] sm:$0xff]
      %v1277 = vld [vmem:[%s7 + $0x48] sm:$0xff]
      %v1278 = vld [vmem:[%s7 + $0x50] sm:$0xff]
      %v1279 = vld [vmem:[%s7 + $0x58] sm:$0xff]
      %v1280 = vld [vmem:[%s7 + $0x60] sm:$0xff]
      %v1281 = vld [vmem:[%s7 + $0x68] sm:$0xff]
      %v1282 = vld [vmem:[%s7 + $0x70] sm:$0xff]
      %v1283 = vld [vmem:[%s7 + $0x78] sm:$0xff]
      %v1284 = vld [vmem:[%s7 + $0x80] sm:$0xff]
      %v1285 = vld [vmem:[%s7 + $0x88] sm:$0xff]
      %v1286 = vld [vmem:[%s7 + $0x90] sm:$0xff]
      %v1287 = vld [vmem:[%s7 + $0x98] sm:$0xff]
      %v1288 = vld [vmem:[%s7 + $0xa0] sm:$0xff]
      %v1289 = vld [vmem:[%s7 + $0xa8] sm:$0xff]
      %v1290 = vld [vmem:[%s7 + $0xb0] sm:$0xff]
      %v1291 = vld [vmem:[%s7 + $0xb8] sm:$0xff]
      %v1292 = vld [vmem:[%s7 + $0xc0] sm:$0xff]
      %v1293 = vld [vmem:[%s7 + $0xc8] sm:$0xff]
      %v1294 = vld [vmem:[%s7 + $0xd0] sm:$0xff]
      %v1295 = vld [vmem:[%s7 + $0xd8] sm:$0xff]
      %v1296 = vld [vmem:[%s7 + $0xe0] sm:$0xff]
      %v1297 = vld [vmem:[%s7 + $0xe8] sm:$0xff]
      %v1298 = vld [vmem:[%s7 + $0xf0] sm:$0xff]
      %v1299 = vld [vmem:[%s7 + $0xf8] sm:$0xff]
      %v1300 = vld [vmem:[%s7 + $0x100] sm:$0xff]
      %v1301 = vld [vmem:[%s7 + $0x108] sm:$0xff]
      %v1302 = vld [vmem:[%s7 + $0x110] sm:$0xff]
      %v1303 = vld [vmem:[%s7 + $0x118] sm:$0xff]
      %v1304 = vld [vmem:[%s7 + $0x120] sm:$0xff]
      %v1305 = vld [vmem:[%s7 + $0x128] sm:$0xff]
      %v1306 = vld [vmem:[%s7 + $0x130] sm:$0xff]
      %v1307 = vld [vmem:[%s7 + $0x138] sm:$0xff]
      %v1308 = vld [vmem:[%s7 + $0x140] sm:$0xff]
      %v1309 = vld [vmem:[%s7 + $0x148] sm:$0xff]
      %v1310 = vld [vmem:[%s7 + $0x150] sm:$0xff]
      %v1311 = vld [vmem:[%s7 + $0x158] sm:$0xff]
      %v1312 = vld [vmem:[%s7 + $0x160] sm:$0xff]
      %v1313 = vld [vmem:[%s7 + $0x168] sm:$0xff]
      %v1314 = vld [vmem:[%s7 + $0x170] sm:$0xff]
      %v1315 = vld [vmem:[%s7 + $0x178] sm:$0xff]
      %v1316 = vld [vmem:[%s7 + $0x180] sm:$0xff]
      %v1317 = vld [vmem:[%s7 + $0x188] sm:$0xff]
      %v1318 = vld [vmem:[%s7 + $0x190] sm:$0xff]
      %v1319 = vld [vmem:[%s7 + $0x198] sm:$0xff]
      %v1320 = vld [vmem:[%s7 + $0x1a0] sm:$0xff]
      %v1321 = vld [vmem:[%s7 + $0x1a8] sm:$0xff]
      %v1322 = vld [vmem:[%s7 + $0x1b0] sm:$0xff]
      %v1323 = vld [vmem:[%s7 + $0x1b8] sm:$0xff]
      %v1324 = vld [vmem:[%s7 + $0x1c0] sm:$0xff]
      %v1325 = vld [vmem:[%s7 + $0x1c8] sm:$0xff]
      %v1326 = vld [vmem:[%s7 + $0x1d0] sm:$0xff]
      %v1327 = vld [vmem:[%s7 + $0x1d8] sm:$0xff]
      %v1328 = vld [vmem:[%s7 + $0x1e0] sm:$0xff]
      %v1329 = vld [vmem:[%s7 + $0x1e8] sm:$0xff]
      %v1330 = vld [vmem:[%s7 + $0x1f0] sm:$0xff]
      %v1331 = vld [vmem:[%s7 + $0x1f8] sm:$0xff]
      %v1332 = vld [vmem:[%s7 + $0x200] sm:$0xff]
      %v1333 = vld [vmem:[%s7 + $0x208] sm:$0xff]
      %v1334 = vld [vmem:[%s7 + $0x210] sm:$0xff]
      %v1335 = vld [vmem:[%s7 + $0x218] sm:$0xff]
      %v1336 = vld [vmem:[%s7 + $0x220] sm:$0xff]
      %v1337 = vld [vmem:[%s7 + $0x228] sm:$0xff]
      %v1338 = vld [vmem:[%s7 + $0x230] sm:$0xff]
      %v1339 = vld [vmem:[%s7 + $0x238] sm:$0xff]
      %v1340 = vld [vmem:[%s7 + $0x240] sm:$0xff]
      %v1341 = vld [vmem:[%s7 + $0x248] sm:$0xff]
      %v1342 = vld [vmem:[%s7 + $0x250] sm:$0xff]
      %v1343 = vld [vmem:[%s7 + $0x258] sm:$0xff]
      %v1344 = vld [vmem:[%s7 + $0x260] sm:$0xff]
      %v1345 = vld [vmem:[%s7 + $0x268] sm:$0xff]
      %v1346 = vld [vmem:[%s7 + $0x270] sm:$0xff]
      %v1347 = vld [vmem:[%s7 + $0x278] sm:$0xff]
      %v1348 = vld [vmem:[%s7 + $0x280] sm:$0xf]
      %v1349 = vld [vmem:[%s7 + $0x288] sm:$0xf]
      %vm1350 = vcmask 556032
      %v1352 = vsel %vm1350, %v1263, 0
      %v1355 = vsel %vm448, %v1348, 0
      %v1358 = vsel %vm448, %v1349, 0
      %1360 = vmatprep.subr.mxu0 %v1269
      %1361 = vmatpush1.msra.mxu0 %v1268
      %1362 = vmatprep.subr.mxu0 %v1271
      %1363 = vmatpush1.msra.mxu0 %v1270
      %1364 = vmatprep.subr.mxu0 %v1273
      %1365 = vmatpush1.msra.mxu0 %v1272
      %1366 = vmatprep.subr.mxu0 %v1275
      %1367 = vmatpush1.msra.mxu0 %v1274
      %1368 = vmatprep.subr.mxu0 %v1277
      %1369 = vmatpush1.msra.mxu0 %v1276
      %1370 = vmatprep.subr.mxu0 %v1279
      %1371 = vmatpush1.msra.mxu0 %v1278
      %1372 = vmatprep.subr.mxu0 %v1281
      %1373 = vmatpush1.msra.mxu0 %v1280
      %1374 = vmatprep.subr.mxu0 %v1283
      %1375 = vmatpush1.msra.mxu0 %v1282
      %1376 = vmatprep.subr.mxu0 %v1285
      %1377 = vmatpush1.msra.mxu0 %v1284
      %1378 = vmatprep.subr.mxu0 %v1287
      %1379 = vmatpush1.msra.mxu0 %v1286
      %1380 = vmatprep.subr.mxu0 %v1289
      %1381 = vmatpush1.msra.mxu0 %v1288
      %1382 = vmatprep.subr.mxu0 %v1291
      %1383 = vmatpush1.msra.mxu0 %v1290
      %1384 = vmatprep.subr.mxu0 %v1293
      %1385 = vmatpush1.msra.mxu0 %v1292
      %1386 = vmatprep.subr.mxu0 %v1295
      %1387 = vmatpush1.msra.mxu0 %v1294
      %1388 = vmatprep.subr.mxu0 %v1297
      %1389 = vmatpush1.msra.mxu0 %v1296
      %1390 = vmatprep.subr.mxu0 %v1299
      %1391 = vmatpush1.msra.mxu0 %v1298
      %1392 = vmatprep.subr.mxu0 %v1301
      %1393 = vmatpush1.msra.mxu0 %v1300
      %1394 = vmatprep.subr.mxu0 %v1303
      %1395 = vmatpush1.msra.mxu0 %v1302
      %1396 = vmatprep.subr.mxu0 %v1305
      %1397 = vmatpush1.msra.mxu0 %v1304
      %1398 = vmatprep.subr.mxu0 %v1307
      %1399 = vmatpush1.msra.mxu0 %v1306
      %1400 = vmatprep.subr.mxu0 %v1309
      %1401 = vmatpush1.msra.mxu0 %v1308
      %1402 = vmatprep.subr.mxu0 %v1311
      %1403 = vmatpush1.msra.mxu0 %v1310
      %1404 = vmatprep.subr.mxu0 %v1313
      %1405 = vmatpush1.msra.mxu0 %v1312
      %1406 = vmatprep.subr.mxu0 %v1315
      %1407 = vmatpush1.msra.mxu0 %v1314
      %1408 = vmatprep.subr.mxu0 %v1317
      %1409 = vmatpush1.msra.mxu0 %v1316
      %1410 = vmatprep.subr.mxu0 %v1319
      %1411 = vmatpush1.msra.mxu0 %v1318
      %1412 = vmatprep.subr.mxu0 %v1321
      %1413 = vmatpush1.msra.mxu0 %v1320
      %1414 = vmatprep.subr.mxu0 %v1323
      %1415 = vmatpush1.msra.mxu0 %v1322
      %1416 = vmatprep.subr.mxu0 %v1325
      %1417 = vmatpush1.msra.mxu0 %v1324
      %1418 = vmatprep.subr.mxu0 %v1327
      %1419 = vmatpush1.msra.mxu0 %v1326
      %1420 = vmatprep.subr.mxu0 %v1329
      %1421 = vmatpush1.msra.mxu0 %v1328
      %1422 = vmatprep.subr.mxu0 %v1331
      %1423 = vmatpush1.msra.mxu0 %v1330
      %1424 = vmatprep.mubr.f32.mxu0 %v1224
      %1425 = vmatmul.mubr.f32.gmra.mrb[0].mxu0 %v1222
      %v1426 = vpop.f32.mrb[0].mxu0
      %v1427 = vadd.f32 0.0, %v1426
      %v1428 = vpop.f32.mrb[0].mxu0
      %v1429 = vadd.f32 0.0, %v1428
      %1430 = vdwg.mxu0
      %1431 = vmatprep.subr.mxu0 %v1333
      %1432 = vmatpush1.msra.mxu0 %v1332
      %1433 = vmatprep.subr.mxu0 %v1335
      %1434 = vmatpush1.msra.mxu0 %v1334
      %1435 = vmatprep.subr.mxu0 %v1337
      %1436 = vmatpush1.msra.mxu0 %v1336
      %1437 = vmatprep.subr.mxu0 %v1339
      %1438 = vmatpush1.msra.mxu0 %v1338
      %1439 = vmatprep.subr.mxu0 %v1341
      %1440 = vmatpush1.msra.mxu0 %v1340
      %1441 = vmatprep.subr.mxu0 %v1343
      %1442 = vmatpush1.msra.mxu0 %v1342
      %1443 = vmatprep.subr.mxu0 %v1345
      %1444 = vmatpush1.msra.mxu0 %v1344
      %1445 = vmatprep.subr.mxu0 %v1347
      %1446 = vmatpush1.msra.mxu0 %v1346
      %1447 = vmatprep.subr.mxu0 %v1358
      %1448 = vmatpush1.msra.mxu0 %v1355
      %1449 = vmatprep.subr.mxu0 0.0
      %1450 = vmatpush1.msra.mxu0 0.0
      %1451 = vmatprep.subr.mxu0 0.0
      %1452 = vmatpush1.msra.mxu0 0.0
      %1453 = vmatprep.subr.mxu0 0.0
      %1454 = vmatpush1.msra.mxu0 0.0
      %1455 = vmatprep.subr.mxu0 0.0
      %1456 = vmatpush1.msra.mxu0 0.0
      %1457 = vmatprep.subr.mxu0 0.0
      %1458 = vmatpush1.msra.mxu0 0.0
      %1459 = vmatprep.subr.mxu0 0.0
      %1460 = vmatpush1.msra.mxu0 0.0
      %1461 = vmatprep.subr.mxu0 0.0
      %1462 = vmatpush1.msra.mxu0 0.0
      %1463 = vmatprep.subr.mxu0 0.0
      %1464 = vmatpush1.msra.mxu0 0.0
      %1465 = vmatprep.subr.mxu0 0.0
      %1466 = vmatpush1.msra.mxu0 0.0
      %1467 = vmatprep.subr.mxu0 0.0
      %1468 = vmatpush1.msra.mxu0 0.0
      %1469 = vmatprep.subr.mxu0 0.0
      %1470 = vmatpush1.msra.mxu0 0.0
      %1471 = vmatprep.subr.mxu0 0.0
      %1472 = vmatpush1.msra.mxu0 0.0
      %1473 = vmatprep.subr.mxu0 0.0
      %1474 = vmatpush1.msra.mxu0 0.0
      %1475 = vmatprep.subr.mxu0 0.0
      %1476 = vmatpush1.msra.mxu0 0.0
      %1477 = vmatprep.subr.mxu0 0.0
      %1478 = vmatpush1.msra.mxu0 0.0
      %1479 = vmatprep.subr.mxu0 0.0
      %1480 = vmatpush1.msra.mxu0 0.0
      %1481 = vmatprep.subr.mxu0 0.0
      %1482 = vmatpush1.msra.mxu0 0.0
      %1483 = vmatprep.subr.mxu0 0.0
      %1484 = vmatpush1.msra.mxu0 0.0
      %1485 = vmatprep.subr.mxu0 0.0
      %1486 = vmatpush1.msra.mxu0 0.0
      %1487 = vmatprep.subr.mxu0 0.0
      %1488 = vmatpush1.msra.mxu0 0.0
      %1489 = vmatprep.subr.mxu0 0.0
      %1490 = vmatpush1.msra.mxu0 0.0
      %1491 = vmatprep.subr.mxu0 0.0
      %1492 = vmatpush1.msra.mxu0 0.0
      %1493 = vmatprep.subr.mxu0 0.0
      %1494 = vmatpush1.msra.mxu0 0.0
      %1495 = vmatprep.mubr.f32.mxu0 0.0
      %1496 = vmatmul.mubr.f32.gmra.mrb[0].mxu0 %v1352
      %v1497 = vpop.f32.mrb[0].mxu0
      %v1498 = vadd.f32 %v1427, %v1497
      %v1499 = vpop.f32.mrb[0].mxu0
      %v1500 = vadd.f32 %v1429, %v1499
      %1501 = vdwg.mxu0
      %v1504 = vcombine.low %v1498, %v1500
      %v1506 = vunpack.c.l.s4 1983009808
      %v1507 = vunpack.c.0.s8 %v1506
      %v1508 = vlaneseq
      %v1509 = vshrl.u32 %v1508, 7
      %v1510 = vsub.s32 %v1507, %v1509
      %v1511 = vrot.slane %v1504, %v1510
      %1513 = vst [vmem:[%s437] sm:$0xf] %v1511
      %p1514 = scmp.lt.s32.totalorder %s22, 1
      %s1515 = scalar_select %p1514, %s22, 1
      %s1516 = smul.addr %s1515, 2
      %s1517 = smul.addr %s1516, 2
      %s1518 = scalar_lea.vmem %s11, %s1517
      // Predicated region
      $region65: #{_decoder_forward.1} parent=63 // pred_check
        %p1519 = pneg %p291
      $region66: #{_decoder_forward.1} parent=63 // pred_check_branch
        %1521 = sbr.rel (%p1519) target = $region68
      $region67: #{_decoder_forward.1} parent=63 // pred_region
        _
      $region68: #{_decoder_forward.1} parent=63 // pred_fallthru
        _
    $region64: #{_decoder_forward.1} parent=5 // pred_fallthru
      _
    %p1522 = scmp.le.s32.totalorder 2, %s17
    // Predicated region
    $region69: #{_decoder_forward.1} parent=5 // pred_check
      %p1523 = pneg %p1522
    $region70: #{_decoder_forward.1} parent=5 // pred_check_branch
      %1525 = sbr.rel (%p1523) target = $region72
    $region71: #{_decoder_forward.1} parent=5 // pred_region
      %s1526 = ssub.s32 %s17, 2
      // Predicated region
      $region73: #{_decoder_forward.1} parent=71 // pred_check
        %p1527 = pneg %p297
      $region74: #{_decoder_forward.1} parent=71 // pred_check_branch
        %1529 = sbr.rel (%p1527) target = $region76
      $region75: #{_decoder_forward.1} parent=71 // pred_region
        %p1530 = scmp.lt.s32.totalorder %s23, 1
        %s1531 = scalar_select %p1530, %s23, 1
        %s1532 = smul.addr %s1531, 2
        %s1533 = smul.addr %s1532, 2
        %s1534 = scalar_lea.vmem %s11, %s1533
      $region76: #{_decoder_forward.1} parent=71 // pred_fallthru
        _
    $region72: #{_decoder_forward.1} parent=5 // pred_fallthru
      _
  $region6: #{_decoder_forward.1} parent=0 // loop_footer
    %s21 = sadd.s32 1, %s17
  $region7: #{_decoder_forward.1} parent=0 // loop_footer_branch
    %16 = sbr.rel target = $region3
  $region8: #{_decoder_forward.1} parent=0 // loop_exit
    _

</llo_original>
